<compile_context>
chip_gen: v7x
topology: tpu7x:2x2x1
jax: 0.10.0
libtpu: 0.0.40
codegen_flags: <defaults>
</compile_context>

<pallas_src>
import jax
import jax.numpy as jnp
from jax.experimental import pallas as pl
from jax.experimental.pallas import tpu as pltpu

HIDDEN = 32          # hidden_size == emb_size (Block.ff_emb requires them equal)
WIDEN = 2            # Block widen_factor
FF = HIDDEN * WIDEN  # 64
LAYERS = 4           # hidden_layers
VOCAB = 1000         # nn.Embedding(1000, emb_size) for time_emb='learnable'
IN_DIM = 2           # input_mlp: Linear(2, emb_size)
OUT_DIM = 2          # output_mlp: Linear(hidden_size, 2)
EPS = 1e-5           # nn.LayerNorm default eps

# Kernel weight-argument order (after packing in _pack_params).
KPARAM_ORDER = ("w_in", "b_in", "ln_g", "ln_b", "ff_w", "fe_wp", "ffe_bp",
                "fi_w", "fi_b", "fo_w", "fo_b", "w_out", "b_out")


def _silu(z):
    # nn.SiLU(): z * sigmoid(z); jax.nn.sigmoid -> single EUP logistic op.
    return z * jax.nn.sigmoid(z)


def mlp_kernel(x_ref, temb_ref,
               w_in_ref, b_in_ref,
               ln_g_ref, ln_b_ref,
               ff_w_ref,
               fe_wp_ref, ffe_bp_ref,
               fi_w_ref, fi_b_ref,
               fo_w_ref, fo_b_ref,
               w_out_ref, b_out_ref,
               o_ref):
    f32 = jnp.float32
    bf16 = jnp.bfloat16

    x = x_ref[...].astype(bf16)        # (BB, 2)   bf16 MXU operand
    temb = temb_ref[...].astype(bf16)  # (BB, H)   bf16 MXU operand

    # x_emb = input_mlp(x)   (bf16 operands, f32 accumulation)
    h = jnp.dot(x, w_in_ref[...], preferred_element_type=f32) + b_in_ref[...]

    # Hoisted, loop-invariant time-embedding path for all layers at once:
    # emb_all[:, l*FF:(l+1)*FF] == t_emb @ fe_w[l] + (ff_b[l] + fe_b[l]).
    emb_all = (jnp.dot(temb, fe_wp_ref[...], preferred_element_type=f32)
               + ffe_bp_ref[...])                               # (BB, LAYERS*FF)

    # 4 residual Blocks, statically unrolled; all matmuls on the MXU.
    for l in range(LAYERS):
        # LayerNorm(hidden) in f32
        mu = jnp.mean(h, axis=-1, keepdims=True)
        var = jnp.mean(jnp.square(h - mu), axis=-1, keepdims=True)
        xn = (h - mu) * jax.lax.rsqrt(var + EPS)
        xn = xn * ln_g_ref[l] + ln_b_ref[l]                     # (BB, H)

        # h' = ff(silu(ln(x))) + ff_emb(emb)   (emb part pre-computed above)
        a = _silu(xn).astype(bf16)
        hh = jnp.dot(a, ff_w_ref[l], preferred_element_type=f32)
        hh = hh + emb_all[:, l * FF:(l + 1) * FF]

        hh = _silu(hh).astype(bf16)
        hh = jnp.dot(hh, fi_w_ref[l], preferred_element_type=f32) + fi_b_ref[l]
        hh = _silu(hh).astype(bf16)
        hh = jnp.dot(hh, fo_w_ref[l], preferred_element_type=f32) + fo_b_ref[l]

        h = h + hh                                              # residual (f32)

    # output_mlp
    out = (jnp.dot(h.astype(bf16), w_out_ref[...], preferred_element_type=f32)
           + b_out_ref[...])
    o_ref[...] = out.astype(o_ref.dtype)


def _pick_batch_tile(B):
    """Multiple-of-8 batch tile giving >=2 grid steps when possible (v7x megacore)."""
    for cand in (256, 128, 64, 32, 16, 8):
        if B % cand == 0 and B // cand >= 2:
            return cand
    return B


def _pack_params(params):
    """bf16-cast matmul weights; pack/hoist the ff_emb path; fold ff_b + fe_b."""
    bf16 = jnp.bfloat16
    H = HIDDEN
    # (LAYERS, H, FF) -> (H, LAYERS*FF): column block l is fe_w[l].
    fe_wp = jnp.transpose(params["fe_w"], (1, 0, 2)).reshape(H, LAYERS * FF)
    # Combined ff_b + fe_b, packed to match fe_wp's column blocks.
    ffe_bp = jnp.transpose(params["ff_b"] + params["fe_b"],
                           (1, 0, 2)).reshape(1, LAYERS * FF)
    return {
        "w_in": params["w_in"].astype(bf16),
        "b_in": params["b_in"],
        "ln_g": params["ln_g"],
        "ln_b": params["ln_b"],
        "ff_w": params["ff_w"].astype(bf16),
        "fe_wp": fe_wp.astype(bf16),
        "ffe_bp": ffe_bp,
        "fi_w": params["fi_w"].astype(bf16),
        "fi_b": params["fi_b"],
        "fo_w": params["fo_w"].astype(bf16),
        "fo_b": params["fo_b"],
        "w_out": params["w_out"].astype(bf16),
        "b_out": params["b_out"],
    }


def mlp_forward(x, t, params):
    B = x.shape[0]
    bb = _pick_batch_tile(B)

    # glue: nn.Embedding(1000, emb_size) lookup is a dynamic row gather ->
    # done in plain JAX outside the kernel.
    t_emb = params["emb_table"][t]

    packed = _pack_params(params)
    weights = [packed[k] for k in KPARAM_ORDER]

    in_specs = [pl.BlockSpec((bb, IN_DIM), lambda i: (i, 0)),
                pl.BlockSpec((bb, HIDDEN), lambda i: (i, 0))]
    in_specs += [pl.BlockSpec(w.shape, lambda i, n=w.ndim: (0,) * n)
                 for w in weights]

    out = pl.pallas_call(
        mlp_kernel,
        out_shape=jax.ShapeDtypeStruct((B, OUT_DIM), x.dtype),
        grid_spec=pl.GridSpec(
            grid=(B // bb,),
            in_specs=in_specs,
            out_specs=pl.BlockSpec((bb, OUT_DIM), lambda i: (i, 0)),
        ),
        compiler_params=pltpu.CompilerParams(
            dimension_semantics=("parallel",)),
    )(x, t_emb, *weights)
    return out


def init_params(key):
    """Deterministic synthetic parameters (shapes follow MLP.__init__)."""
    H, W = HIDDEN, FF
    ks = jax.random.split(key, 16)
    s = 0.05
    p = {
        "emb_table": s * jax.random.normal(ks[0], (VOCAB, H), jnp.float32),
        "w_in": s * jax.random.normal(ks[1], (IN_DIM, H), jnp.float32),
        "b_in": s * jax.random.normal(ks[2], (1, H), jnp.float32),
        # per-Block parameters stacked along a leading layer axis
        "ln_g": jnp.ones((LAYERS, 1, H), jnp.float32),
        "ln_b": jnp.zeros((LAYERS, 1, H), jnp.float32),
        "ff_w": s * jax.random.normal(ks[3], (LAYERS, H, W), jnp.float32),
        "ff_b": s * jax.random.normal(ks[4], (LAYERS, 1, W), jnp.float32),
        "fe_w": s * jax.random.normal(ks[5], (LAYERS, H, W), jnp.float32),
        "fe_b": s * jax.random.normal(ks[6], (LAYERS, 1, W), jnp.float32),
        "fi_w": s * jax.random.normal(ks[7], (LAYERS, W, W), jnp.float32),
        "fi_b": s * jax.random.normal(ks[8], (LAYERS, 1, W), jnp.float32),
        "fo_w": s * jax.random.normal(ks[9], (LAYERS, W, H), jnp.float32),
        "fo_b": s * jax.random.normal(ks[10], (LAYERS, 1, H), jnp.float32),
        "w_out": s * jax.random.normal(ks[11], (H, OUT_DIM), jnp.float32),
        "b_out": s * jax.random.normal(ks[12], (1, OUT_DIM), jnp.float32),
    }
    return p


def mlp_reference(x, t, params, matmul_dtype=jnp.float32):
    """Pure-JAX reference mirroring the PyTorch forward.

    matmul_dtype selects the MXU operand precision policy: jnp.float32 is the
    exact PyTorch-f32 math; jnp.bfloat16 mirrors the kernel's bf16-operand /
    f32-accumulate matmuls.
    """
    md = matmul_dtype
    dot = lambda a, b: jnp.dot(a.astype(md), b.astype(md),
                               preferred_element_type=jnp.float32)
    t_emb = params["emb_table"][t]
    h = dot(x, params["w_in"]) + params["b_in"][0]
    for l in range(LAYERS):
        mu = h.mean(-1, keepdims=True)
        var = ((h - mu) ** 2).mean(-1, keepdims=True)
        xn = (h - mu) / jnp.sqrt(var + EPS) * params["ln_g"][l, 0] + params["ln_b"][l, 0]
        hh = dot(_silu(xn), params["ff_w"][l]) + params["ff_b"][l, 0]
        hh = hh + dot(t_emb, params["fe_w"][l]) + params["fe_b"][l, 0]
        hh = _silu(hh)
        hh = _silu(dot(hh, params["fi_w"][l]) + params["fi_b"][l, 0])
        hh = dot(hh, params["fo_w"][l]) + params["fo_b"][l, 0]
        h = h + hh
    return dot(h, params["w_out"]) + params["b_out"][0]


if __name__ == "__main__":
    key = jax.random.PRNGKey(0)
    kx, kt, kp = jax.random.split(key, 3)

    B = 8
    x = jax.random.normal(kx, (B, IN_DIM), jnp.float32)          # 2-D points
    t = jax.random.randint(kt, (B,), 0, VOCAB, jnp.int32)        # diffusion timesteps
    params = init_params(kp)

    out = mlp_forward(x, t, params)
    out = jax.block_until_ready(out)
    assert out.shape == (B, OUT_DIM)

    # Strict check against a reference using the same bf16-operand matmul policy.
    ref_bf16 = mlp_reference(x, t, params, matmul_dtype=jnp.bfloat16)
    assert jnp.allclose(out, ref_bf16, rtol=1e-3, atol=1e-3), \
        "mismatch vs bf16-matched JAX reference"

    # Loose sanity check against the full-f32 PyTorch-equivalent math.
    ref_f32 = mlp_reference(x, t, params, matmul_dtype=jnp.float32)
    assert jnp.allclose(out, ref_f32, rtol=5e-2, atol=5e-3), \
        "mismatch vs f32 JAX reference"

    print("KERNEL_OK")
</pallas_src>

<mosaic_0001>
module attributes {stable_mosaic.version = 11 : i64} {
  func.func @mlp_kernel(%arg0: i32, %arg1: memref<8x2xf32, #tpu.memory_space<vmem>>, %arg2: memref<8x32xf32, #tpu.memory_space<vmem>>, %arg3: memref<2x32xbf16, #tpu.memory_space<vmem>>, %arg4: memref<1x32xf32, #tpu.memory_space<vmem>>, %arg5: memref<4x1x32xf32, #tpu.memory_space<vmem>>, %arg6: memref<4x1x32xf32, #tpu.memory_space<vmem>>, %arg7: memref<4x32x64xbf16, #tpu.memory_space<vmem>>, %arg8: memref<32x256xbf16, #tpu.memory_space<vmem>>, %arg9: memref<1x256xf32, #tpu.memory_space<vmem>>, %arg10: memref<4x64x64xbf16, #tpu.memory_space<vmem>>, %arg11: memref<4x1x64xf32, #tpu.memory_space<vmem>>, %arg12: memref<4x64x32xbf16, #tpu.memory_space<vmem>>, %arg13: memref<4x1x32xf32, #tpu.memory_space<vmem>>, %arg14: memref<32x2xbf16, #tpu.memory_space<vmem>>, %arg15: memref<1x2xf32, #tpu.memory_space<vmem>>, %arg16: memref<8x2xf32, #tpu.memory_space<vmem>>) attributes {dimension_semantics = [#tpu.dimension_semantics<parallel>], iteration_bounds = array<i64: 1>, scalar_prefetch = 0 : i64, scratch_operands = 0 : i64, tpu.core_type = #tpu.core_type<tc>, window_params = [{transform_indices = @transform_0, window_bounds = array<i64: 8, 2>}, {transform_indices = @transform_1, window_bounds = array<i64: 8, 32>}, {pipeline_mode = #tpu.pipeline_mode<synchronous>, transform_indices = @transform_2, window_bounds = array<i64: 2, 32>}, {pipeline_mode = #tpu.pipeline_mode<synchronous>, transform_indices = @transform_3, window_bounds = array<i64: 1, 32>}, {pipeline_mode = #tpu.pipeline_mode<synchronous>, transform_indices = @transform_4, window_bounds = array<i64: 4, 1, 32>}, {pipeline_mode = #tpu.pipeline_mode<synchronous>, transform_indices = @transform_5, window_bounds = array<i64: 4, 1, 32>}, {pipeline_mode = #tpu.pipeline_mode<synchronous>, transform_indices = @transform_6, window_bounds = array<i64: 4, 32, 64>}, {pipeline_mode = #tpu.pipeline_mode<synchronous>, transform_indices = @transform_7, window_bounds = array<i64: 32, 256>}, {pipeline_mode = #tpu.pipeline_mode<synchronous>, transform_indices = @transform_8, window_bounds = array<i64: 1, 256>}, {pipeline_mode = #tpu.pipeline_mode<synchronous>, transform_indices = @transform_9, window_bounds = array<i64: 4, 64, 64>}, {pipeline_mode = #tpu.pipeline_mode<synchronous>, transform_indices = @transform_10, window_bounds = array<i64: 4, 1, 64>}, {pipeline_mode = #tpu.pipeline_mode<synchronous>, transform_indices = @transform_11, window_bounds = array<i64: 4, 64, 32>}, {pipeline_mode = #tpu.pipeline_mode<synchronous>, transform_indices = @transform_12, window_bounds = array<i64: 4, 1, 32>}, {pipeline_mode = #tpu.pipeline_mode<synchronous>, transform_indices = @transform_13, window_bounds = array<i64: 32, 2>}, {pipeline_mode = #tpu.pipeline_mode<synchronous>, transform_indices = @transform_14, window_bounds = array<i64: 1, 2>}, {transform_indices = @transform_15, window_bounds = array<i64: 8, 2>}]} {
    %c0 = arith.constant 0 : index
    %c0_0 = arith.constant 0 : index
    %0 = vector.load %arg1[%c0, %c0_0] : memref<8x2xf32, #tpu.memory_space<vmem>>, vector<8x2xf32>
    %1 = arith.truncf %0 : vector<8x2xf32> to vector<8x2xbf16>
    %c0_1 = arith.constant 0 : index
    %c0_2 = arith.constant 0 : index
    %2 = vector.load %arg2[%c0_1, %c0_2] : memref<8x32xf32, #tpu.memory_space<vmem>>, vector<8x32xf32>
    %3 = arith.truncf %2 : vector<8x32xf32> to vector<8x32xbf16>
    %c0_3 = arith.constant 0 : index
    %c0_4 = arith.constant 0 : index
    %4 = vector.load %arg3[%c0_3, %c0_4] : memref<2x32xbf16, #tpu.memory_space<vmem>>, vector<2x32xbf16>
    %cst = arith.constant dense<0.000000e+00> : vector<8x32xf32>
    %5 = tpu.matmul %1, %4, %cst {dimension_numbers = #tpu.dot_dimension_numbers<[1], [0], [0], [1], [0, 0, 1, 1], [], []>} : vector<8x2xbf16>, vector<2x32xbf16>, vector<8x32xf32> -> vector<8x32xf32>
    %c0_5 = arith.constant 0 : index
    %c0_6 = arith.constant 0 : index
    %6 = vector.load %arg4[%c0_5, %c0_6] : memref<1x32xf32, #tpu.memory_space<vmem>>, vector<1x32xf32>
    %7 = vector.broadcast %6 : vector<1x32xf32> to vector<8x32xf32>
    %8 = arith.addf %5, %7 : vector<8x32xf32>
    %c0_7 = arith.constant 0 : index
    %c0_8 = arith.constant 0 : index
    %9 = vector.load %arg8[%c0_7, %c0_8] : memref<32x256xbf16, #tpu.memory_space<vmem>>, vector<32x256xbf16>
    %cst_9 = arith.constant dense<0.000000e+00> : vector<8x256xf32>
    %10 = tpu.matmul %3, %9, %cst_9 {dimension_numbers = #tpu.dot_dimension_numbers<[1], [0], [0], [1], [0, 0, 1, 1], [], []>} : vector<8x32xbf16>, vector<32x256xbf16>, vector<8x256xf32> -> vector<8x256xf32>
    %c0_10 = arith.constant 0 : index
    %c0_11 = arith.constant 0 : index
    %11 = vector.load %arg9[%c0_10, %c0_11] : memref<1x256xf32, #tpu.memory_space<vmem>>, vector<1x256xf32>
    %12 = vector.broadcast %11 : vector<1x256xf32> to vector<8x256xf32>
    %13 = arith.addf %10, %12 : vector<8x256xf32>
    %cst_12 = arith.constant dense<0.000000e+00> : vector<8xf32>
    %14 = vector.multi_reduction <add>, %8, %cst_12 [1] : vector<8x32xf32> to vector<8xf32>
    %15 = vector.shape_cast %14 : vector<8xf32> to vector<8x1xf32>
    %cst_13 = arith.constant 3.200000e+01 : f32
    %16 = vector.broadcast %cst_13 : f32 to vector<8x1xf32>
    %17 = arith.divf %15, %16 : vector<8x1xf32>
    %18 = vector.broadcast %17 : vector<8x1xf32> to vector<8x32xf32>
    %19 = arith.subf %8, %18 : vector<8x32xf32>
    %20 = arith.mulf %19, %19 : vector<8x32xf32>
    %cst_14 = arith.constant dense<0.000000e+00> : vector<8xf32>
    %21 = vector.multi_reduction <add>, %20, %cst_14 [1] : vector<8x32xf32> to vector<8xf32>
    %22 = vector.shape_cast %21 : vector<8xf32> to vector<8x1xf32>
    %cst_15 = arith.constant 3.200000e+01 : f32
    %23 = vector.broadcast %cst_15 : f32 to vector<8x1xf32>
    %24 = arith.divf %22, %23 : vector<8x1xf32>
    %25 = vector.broadcast %17 : vector<8x1xf32> to vector<8x32xf32>
    %26 = arith.subf %8, %25 : vector<8x32xf32>
    %cst_16 = arith.constant 9.99999974E-6 : f32
    %27 = vector.broadcast %cst_16 : f32 to vector<8x1xf32>
    %28 = arith.addf %24, %27 : vector<8x1xf32>
    %29 = math.rsqrt %28 : vector<8x1xf32>
    %30 = vector.broadcast %29 : vector<8x1xf32> to vector<8x32xf32>
    %31 = arith.mulf %26, %30 : vector<8x32xf32>
    %c0_17 = arith.constant 0 : index
    %c0_18 = arith.constant 0 : index
    %c0_19 = arith.constant 0 : index
    %32 = vector.load %arg5[%c0_17, %c0_18, %c0_19] : memref<4x1x32xf32, #tpu.memory_space<vmem>>, vector<1x1x32xf32>
    %33 = vector.shape_cast %32 : vector<1x1x32xf32> to vector<1x32xf32>
    %34 = vector.broadcast %33 : vector<1x32xf32> to vector<8x32xf32>
    %35 = arith.mulf %31, %34 : vector<8x32xf32>
    %c0_20 = arith.constant 0 : index
    %c0_21 = arith.constant 0 : index
    %c0_22 = arith.constant 0 : index
    %36 = vector.load %arg6[%c0_20, %c0_21, %c0_22] : memref<4x1x32xf32, #tpu.memory_space<vmem>>, vector<1x1x32xf32>
    %37 = vector.shape_cast %36 : vector<1x1x32xf32> to vector<1x32xf32>
    %38 = vector.broadcast %37 : vector<1x32xf32> to vector<8x32xf32>
    %39 = arith.addf %35, %38 : vector<8x32xf32>
    %40 = arith.negf %39 : vector<8x32xf32>
    %41 = math.exp %40 : vector<8x32xf32>
    %cst_23 = arith.constant 1.000000e+00 : f32
    %42 = vector.broadcast %cst_23 : f32 to vector<8x32xf32>
    %43 = arith.addf %42, %41 : vector<8x32xf32>
    %44 = arith.divf %42, %43 : vector<8x32xf32>
    %45 = arith.mulf %39, %44 : vector<8x32xf32>
    %46 = arith.truncf %45 : vector<8x32xf32> to vector<8x32xbf16>
    %c0_24 = arith.constant 0 : index
    %c0_25 = arith.constant 0 : index
    %c0_26 = arith.constant 0 : index
    %47 = vector.load %arg7[%c0_24, %c0_25, %c0_26] : memref<4x32x64xbf16, #tpu.memory_space<vmem>>, vector<1x32x64xbf16>
    %48 = vector.shape_cast %47 : vector<1x32x64xbf16> to vector<32x64xbf16>
    %cst_27 = arith.constant dense<0.000000e+00> : vector<8x64xf32>
    %49 = tpu.matmul %46, %48, %cst_27 {dimension_numbers = #tpu.dot_dimension_numbers<[1], [0], [0], [1], [0, 0, 1, 1], [], []>} : vector<8x32xbf16>, vector<32x64xbf16>, vector<8x64xf32> -> vector<8x64xf32>
    %50 = vector.extract_strided_slice %13 {offsets = [0, 0], sizes = [8, 64], strides = [1, 1]} : vector<8x256xf32> to vector<8x64xf32>
    %51 = arith.addf %49, %50 : vector<8x64xf32>
    %52 = arith.negf %51 : vector<8x64xf32>
    %53 = math.exp %52 : vector<8x64xf32>
    %cst_28 = arith.constant 1.000000e+00 : f32
    %54 = vector.broadcast %cst_28 : f32 to vector<8x64xf32>
    %55 = arith.addf %54, %53 : vector<8x64xf32>
    %56 = arith.divf %54, %55 : vector<8x64xf32>
    %57 = arith.mulf %51, %56 : vector<8x64xf32>
    %58 = arith.truncf %57 : vector<8x64xf32> to vector<8x64xbf16>
    %c0_29 = arith.constant 0 : index
    %c0_30 = arith.constant 0 : index
    %c0_31 = arith.constant 0 : index
    %59 = vector.load %arg10[%c0_29, %c0_30, %c0_31] : memref<4x64x64xbf16, #tpu.memory_space<vmem>>, vector<1x64x64xbf16>
    %60 = vector.shape_cast %59 : vector<1x64x64xbf16> to vector<64x64xbf16>
    %cst_32 = arith.constant dense<0.000000e+00> : vector<8x64xf32>
    %61 = tpu.matmul %58, %60, %cst_32 {dimension_numbers = #tpu.dot_dimension_numbers<[1], [0], [0], [1], [0, 0, 1, 1], [], []>} : vector<8x64xbf16>, vector<64x64xbf16>, vector<8x64xf32> -> vector<8x64xf32>
    %c0_33 = arith.constant 0 : index
    %c0_34 = arith.constant 0 : index
    %c0_35 = arith.constant 0 : index
    %62 = vector.load %arg11[%c0_33, %c0_34, %c0_35] : memref<4x1x64xf32, #tpu.memory_space<vmem>>, vector<1x1x64xf32>
    %63 = vector.shape_cast %62 : vector<1x1x64xf32> to vector<1x64xf32>
    %64 = vector.broadcast %63 : vector<1x64xf32> to vector<8x64xf32>
    %65 = arith.addf %61, %64 : vector<8x64xf32>
    %66 = arith.negf %65 : vector<8x64xf32>
    %67 = math.exp %66 : vector<8x64xf32>
    %cst_36 = arith.constant 1.000000e+00 : f32
    %68 = vector.broadcast %cst_36 : f32 to vector<8x64xf32>
    %69 = arith.addf %68, %67 : vector<8x64xf32>
    %70 = arith.divf %68, %69 : vector<8x64xf32>
    %71 = arith.mulf %65, %70 : vector<8x64xf32>
    %72 = arith.truncf %71 : vector<8x64xf32> to vector<8x64xbf16>
    %c0_37 = arith.constant 0 : index
    %c0_38 = arith.constant 0 : index
    %c0_39 = arith.constant 0 : index
    %73 = vector.load %arg12[%c0_37, %c0_38, %c0_39] : memref<4x64x32xbf16, #tpu.memory_space<vmem>>, vector<1x64x32xbf16>
    %74 = vector.shape_cast %73 : vector<1x64x32xbf16> to vector<64x32xbf16>
    %cst_40 = arith.constant dense<0.000000e+00> : vector<8x32xf32>
    %75 = tpu.matmul %72, %74, %cst_40 {dimension_numbers = #tpu.dot_dimension_numbers<[1], [0], [0], [1], [0, 0, 1, 1], [], []>} : vector<8x64xbf16>, vector<64x32xbf16>, vector<8x32xf32> -> vector<8x32xf32>
    %c0_41 = arith.constant 0 : index
    %c0_42 = arith.constant 0 : index
    %c0_43 = arith.constant 0 : index
    %76 = vector.load %arg13[%c0_41, %c0_42, %c0_43] : memref<4x1x32xf32, #tpu.memory_space<vmem>>, vector<1x1x32xf32>
    %77 = vector.shape_cast %76 : vector<1x1x32xf32> to vector<1x32xf32>
    %78 = vector.broadcast %77 : vector<1x32xf32> to vector<8x32xf32>
    %79 = arith.addf %75, %78 : vector<8x32xf32>
    %80 = arith.addf %8, %79 : vector<8x32xf32>
    %cst_44 = arith.constant dense<0.000000e+00> : vector<8xf32>
    %81 = vector.multi_reduction <add>, %80, %cst_44 [1] : vector<8x32xf32> to vector<8xf32>
    %82 = vector.shape_cast %81 : vector<8xf32> to vector<8x1xf32>
    %cst_45 = arith.constant 3.200000e+01 : f32
    %83 = vector.broadcast %cst_45 : f32 to vector<8x1xf32>
    %84 = arith.divf %82, %83 : vector<8x1xf32>
    %85 = vector.broadcast %84 : vector<8x1xf32> to vector<8x32xf32>
    %86 = arith.subf %80, %85 : vector<8x32xf32>
    %87 = arith.mulf %86, %86 : vector<8x32xf32>
    %cst_46 = arith.constant dense<0.000000e+00> : vector<8xf32>
    %88 = vector.multi_reduction <add>, %87, %cst_46 [1] : vector<8x32xf32> to vector<8xf32>
    %89 = vector.shape_cast %88 : vector<8xf32> to vector<8x1xf32>
    %cst_47 = arith.constant 3.200000e+01 : f32
    %90 = vector.broadcast %cst_47 : f32 to vector<8x1xf32>
    %91 = arith.divf %89, %90 : vector<8x1xf32>
    %92 = vector.broadcast %84 : vector<8x1xf32> to vector<8x32xf32>
    %93 = arith.subf %80, %92 : vector<8x32xf32>
    %cst_48 = arith.constant 9.99999974E-6 : f32
    %94 = vector.broadcast %cst_48 : f32 to vector<8x1xf32>
    %95 = arith.addf %91, %94 : vector<8x1xf32>
    %96 = math.rsqrt %95 : vector<8x1xf32>
    %97 = vector.broadcast %96 : vector<8x1xf32> to vector<8x32xf32>
    %98 = arith.mulf %93, %97 : vector<8x32xf32>
    %c1 = arith.constant 1 : index
    %c0_49 = arith.constant 0 : index
    %c0_50 = arith.constant 0 : index
    %99 = vector.load %arg5[%c1, %c0_49, %c0_50] : memref<4x1x32xf32, #tpu.memory_space<vmem>>, vector<1x1x32xf32>
    %100 = vector.shape_cast %99 : vector<1x1x32xf32> to vector<1x32xf32>
    %101 = vector.broadcast %100 : vector<1x32xf32> to vector<8x32xf32>
    %102 = arith.mulf %98, %101 : vector<8x32xf32>
    %c1_51 = arith.constant 1 : index
    %c0_52 = arith.constant 0 : index
    %c0_53 = arith.constant 0 : index
    %103 = vector.load %arg6[%c1_51, %c0_52, %c0_53] : memref<4x1x32xf32, #tpu.memory_space<vmem>>, vector<1x1x32xf32>
    %104 = vector.shape_cast %103 : vector<1x1x32xf32> to vector<1x32xf32>
    %105 = vector.broadcast %104 : vector<1x32xf32> to vector<8x32xf32>
    %106 = arith.addf %102, %105 : vector<8x32xf32>
    %107 = arith.negf %106 : vector<8x32xf32>
    %108 = math.exp %107 : vector<8x32xf32>
    %cst_54 = arith.constant 1.000000e+00 : f32
    %109 = vector.broadcast %cst_54 : f32 to vector<8x32xf32>
    %110 = arith.addf %109, %108 : vector<8x32xf32>
    %111 = arith.divf %109, %110 : vector<8x32xf32>
    %112 = arith.mulf %106, %111 : vector<8x32xf32>
    %113 = arith.truncf %112 : vector<8x32xf32> to vector<8x32xbf16>
    %c1_55 = arith.constant 1 : index
    %c0_56 = arith.constant 0 : index
    %c0_57 = arith.constant 0 : index
    %114 = vector.load %arg7[%c1_55, %c0_56, %c0_57] : memref<4x32x64xbf16, #tpu.memory_space<vmem>>, vector<1x32x64xbf16>
    %115 = vector.shape_cast %114 : vector<1x32x64xbf16> to vector<32x64xbf16>
    %cst_58 = arith.constant dense<0.000000e+00> : vector<8x64xf32>
    %116 = tpu.matmul %113, %115, %cst_58 {dimension_numbers = #tpu.dot_dimension_numbers<[1], [0], [0], [1], [0, 0, 1, 1], [], []>} : vector<8x32xbf16>, vector<32x64xbf16>, vector<8x64xf32> -> vector<8x64xf32>
    %117 = vector.extract_strided_slice %13 {offsets = [0, 64], sizes = [8, 64], strides = [1, 1]} : vector<8x256xf32> to vector<8x64xf32>
    %118 = arith.addf %116, %117 : vector<8x64xf32>
    %119 = arith.negf %118 : vector<8x64xf32>
    %120 = math.exp %119 : vector<8x64xf32>
    %cst_59 = arith.constant 1.000000e+00 : f32
    %121 = vector.broadcast %cst_59 : f32 to vector<8x64xf32>
    %122 = arith.addf %121, %120 : vector<8x64xf32>
    %123 = arith.divf %121, %122 : vector<8x64xf32>
    %124 = arith.mulf %118, %123 : vector<8x64xf32>
    %125 = arith.truncf %124 : vector<8x64xf32> to vector<8x64xbf16>
    %c1_60 = arith.constant 1 : index
    %c0_61 = arith.constant 0 : index
    %c0_62 = arith.constant 0 : index
    %126 = vector.load %arg10[%c1_60, %c0_61, %c0_62] : memref<4x64x64xbf16, #tpu.memory_space<vmem>>, vector<1x64x64xbf16>
    %127 = vector.shape_cast %126 : vector<1x64x64xbf16> to vector<64x64xbf16>
    %cst_63 = arith.constant dense<0.000000e+00> : vector<8x64xf32>
    %128 = tpu.matmul %125, %127, %cst_63 {dimension_numbers = #tpu.dot_dimension_numbers<[1], [0], [0], [1], [0, 0, 1, 1], [], []>} : vector<8x64xbf16>, vector<64x64xbf16>, vector<8x64xf32> -> vector<8x64xf32>
    %c1_64 = arith.constant 1 : index
    %c0_65 = arith.constant 0 : index
    %c0_66 = arith.constant 0 : index
    %129 = vector.load %arg11[%c1_64, %c0_65, %c0_66] : memref<4x1x64xf32, #tpu.memory_space<vmem>>, vector<1x1x64xf32>
    %130 = vector.shape_cast %129 : vector<1x1x64xf32> to vector<1x64xf32>
    %131 = vector.broadcast %130 : vector<1x64xf32> to vector<8x64xf32>
    %132 = arith.addf %128, %131 : vector<8x64xf32>
    %133 = arith.negf %132 : vector<8x64xf32>
    %134 = math.exp %133 : vector<8x64xf32>
    %cst_67 = arith.constant 1.000000e+00 : f32
    %135 = vector.broadcast %cst_67 : f32 to vector<8x64xf32>
    %136 = arith.addf %135, %134 : vector<8x64xf32>
    %137 = arith.divf %135, %136 : vector<8x64xf32>
    %138 = arith.mulf %132, %137 : vector<8x64xf32>
    %139 = arith.truncf %138 : vector<8x64xf32> to vector<8x64xbf16>
    %c1_68 = arith.constant 1 : index
    %c0_69 = arith.constant 0 : index
    %c0_70 = arith.constant 0 : index
    %140 = vector.load %arg12[%c1_68, %c0_69, %c0_70] : memref<4x64x32xbf16, #tpu.memory_space<vmem>>, vector<1x64x32xbf16>
    %141 = vector.shape_cast %140 : vector<1x64x32xbf16> to vector<64x32xbf16>
    %cst_71 = arith.constant dense<0.000000e+00> : vector<8x32xf32>
    %142 = tpu.matmul %139, %141, %cst_71 {dimension_numbers = #tpu.dot_dimension_numbers<[1], [0], [0], [1], [0, 0, 1, 1], [], []>} : vector<8x64xbf16>, vector<64x32xbf16>, vector<8x32xf32> -> vector<8x32xf32>
    %c1_72 = arith.constant 1 : index
    %c0_73 = arith.constant 0 : index
    %c0_74 = arith.constant 0 : index
    %143 = vector.load %arg13[%c1_72, %c0_73, %c0_74] : memref<4x1x32xf32, #tpu.memory_space<vmem>>, vector<1x1x32xf32>
    %144 = vector.shape_cast %143 : vector<1x1x32xf32> to vector<1x32xf32>
    %145 = vector.broadcast %144 : vector<1x32xf32> to vector<8x32xf32>
    %146 = arith.addf %142, %145 : vector<8x32xf32>
    %147 = arith.addf %80, %146 : vector<8x32xf32>
    %cst_75 = arith.constant dense<0.000000e+00> : vector<8xf32>
    %148 = vector.multi_reduction <add>, %147, %cst_75 [1] : vector<8x32xf32> to vector<8xf32>
    %149 = vector.shape_cast %148 : vector<8xf32> to vector<8x1xf32>
    %cst_76 = arith.constant 3.200000e+01 : f32
    %150 = vector.broadcast %cst_76 : f32 to vector<8x1xf32>
    %151 = arith.divf %149, %150 : vector<8x1xf32>
    %152 = vector.broadcast %151 : vector<8x1xf32> to vector<8x32xf32>
    %153 = arith.subf %147, %152 : vector<8x32xf32>
    %154 = arith.mulf %153, %153 : vector<8x32xf32>
    %cst_77 = arith.constant dense<0.000000e+00> : vector<8xf32>
    %155 = vector.multi_reduction <add>, %154, %cst_77 [1] : vector<8x32xf32> to vector<8xf32>
    %156 = vector.shape_cast %155 : vector<8xf32> to vector<8x1xf32>
    %cst_78 = arith.constant 3.200000e+01 : f32
    %157 = vector.broadcast %cst_78 : f32 to vector<8x1xf32>
    %158 = arith.divf %156, %157 : vector<8x1xf32>
    %159 = vector.broadcast %151 : vector<8x1xf32> to vector<8x32xf32>
    %160 = arith.subf %147, %159 : vector<8x32xf32>
    %cst_79 = arith.constant 9.99999974E-6 : f32
    %161 = vector.broadcast %cst_79 : f32 to vector<8x1xf32>
    %162 = arith.addf %158, %161 : vector<8x1xf32>
    %163 = math.rsqrt %162 : vector<8x1xf32>
    %164 = vector.broadcast %163 : vector<8x1xf32> to vector<8x32xf32>
    %165 = arith.mulf %160, %164 : vector<8x32xf32>
    %c2 = arith.constant 2 : index
    %c0_80 = arith.constant 0 : index
    %c0_81 = arith.constant 0 : index
    %166 = vector.load %arg5[%c2, %c0_80, %c0_81] : memref<4x1x32xf32, #tpu.memory_space<vmem>>, vector<1x1x32xf32>
    %167 = vector.shape_cast %166 : vector<1x1x32xf32> to vector<1x32xf32>
    %168 = vector.broadcast %167 : vector<1x32xf32> to vector<8x32xf32>
    %169 = arith.mulf %165, %168 : vector<8x32xf32>
    %c2_82 = arith.constant 2 : index
    %c0_83 = arith.constant 0 : index
    %c0_84 = arith.constant 0 : index
    %170 = vector.load %arg6[%c2_82, %c0_83, %c0_84] : memref<4x1x32xf32, #tpu.memory_space<vmem>>, vector<1x1x32xf32>
    %171 = vector.shape_cast %170 : vector<1x1x32xf32> to vector<1x32xf32>
    %172 = vector.broadcast %171 : vector<1x32xf32> to vector<8x32xf32>
    %173 = arith.addf %169, %172 : vector<8x32xf32>
    %174 = arith.negf %173 : vector<8x32xf32>
    %175 = math.exp %174 : vector<8x32xf32>
    %cst_85 = arith.constant 1.000000e+00 : f32
    %176 = vector.broadcast %cst_85 : f32 to vector<8x32xf32>
    %177 = arith.addf %176, %175 : vector<8x32xf32>
    %178 = arith.divf %176, %177 : vector<8x32xf32>
    %179 = arith.mulf %173, %178 : vector<8x32xf32>
    %180 = arith.truncf %179 : vector<8x32xf32> to vector<8x32xbf16>
    %c2_86 = arith.constant 2 : index
    %c0_87 = arith.constant 0 : index
    %c0_88 = arith.constant 0 : index
    %181 = vector.load %arg7[%c2_86, %c0_87, %c0_88] : memref<4x32x64xbf16, #tpu.memory_space<vmem>>, vector<1x32x64xbf16>
    %182 = vector.shape_cast %181 : vector<1x32x64xbf16> to vector<32x64xbf16>
    %cst_89 = arith.constant dense<0.000000e+00> : vector<8x64xf32>
    %183 = tpu.matmul %180, %182, %cst_89 {dimension_numbers = #tpu.dot_dimension_numbers<[1], [0], [0], [1], [0, 0, 1, 1], [], []>} : vector<8x32xbf16>, vector<32x64xbf16>, vector<8x64xf32> -> vector<8x64xf32>
    %184 = vector.extract_strided_slice %13 {offsets = [0, 128], sizes = [8, 64], strides = [1, 1]} : vector<8x256xf32> to vector<8x64xf32>
    %185 = arith.addf %183, %184 : vector<8x64xf32>
    %186 = arith.negf %185 : vector<8x64xf32>
    %187 = math.exp %186 : vector<8x64xf32>
    %cst_90 = arith.constant 1.000000e+00 : f32
    %188 = vector.broadcast %cst_90 : f32 to vector<8x64xf32>
    %189 = arith.addf %188, %187 : vector<8x64xf32>
    %190 = arith.divf %188, %189 : vector<8x64xf32>
    %191 = arith.mulf %185, %190 : vector<8x64xf32>
    %192 = arith.truncf %191 : vector<8x64xf32> to vector<8x64xbf16>
    %c2_91 = arith.constant 2 : index
    %c0_92 = arith.constant 0 : index
    %c0_93 = arith.constant 0 : index
    %193 = vector.load %arg10[%c2_91, %c0_92, %c0_93] : memref<4x64x64xbf16, #tpu.memory_space<vmem>>, vector<1x64x64xbf16>
    %194 = vector.shape_cast %193 : vector<1x64x64xbf16> to vector<64x64xbf16>
    %cst_94 = arith.constant dense<0.000000e+00> : vector<8x64xf32>
    %195 = tpu.matmul %192, %194, %cst_94 {dimension_numbers = #tpu.dot_dimension_numbers<[1], [0], [0], [1], [0, 0, 1, 1], [], []>} : vector<8x64xbf16>, vector<64x64xbf16>, vector<8x64xf32> -> vector<8x64xf32>
    %c2_95 = arith.constant 2 : index
    %c0_96 = arith.constant 0 : index
    %c0_97 = arith.constant 0 : index
    %196 = vector.load %arg11[%c2_95, %c0_96, %c0_97] : memref<4x1x64xf32, #tpu.memory_space<vmem>>, vector<1x1x64xf32>
    %197 = vector.shape_cast %196 : vector<1x1x64xf32> to vector<1x64xf32>
    %198 = vector.broadcast %197 : vector<1x64xf32> to vector<8x64xf32>
    %199 = arith.addf %195, %198 : vector<8x64xf32>
    %200 = arith.negf %199 : vector<8x64xf32>
    %201 = math.exp %200 : vector<8x64xf32>
    %cst_98 = arith.constant 1.000000e+00 : f32
    %202 = vector.broadcast %cst_98 : f32 to vector<8x64xf32>
    %203 = arith.addf %202, %201 : vector<8x64xf32>
    %204 = arith.divf %202, %203 : vector<8x64xf32>
    %205 = arith.mulf %199, %204 : vector<8x64xf32>
    %206 = arith.truncf %205 : vector<8x64xf32> to vector<8x64xbf16>
    %c2_99 = arith.constant 2 : index
    %c0_100 = arith.constant 0 : index
    %c0_101 = arith.constant 0 : index
    %207 = vector.load %arg12[%c2_99, %c0_100, %c0_101] : memref<4x64x32xbf16, #tpu.memory_space<vmem>>, vector<1x64x32xbf16>
    %208 = vector.shape_cast %207 : vector<1x64x32xbf16> to vector<64x32xbf16>
    %cst_102 = arith.constant dense<0.000000e+00> : vector<8x32xf32>
    %209 = tpu.matmul %206, %208, %cst_102 {dimension_numbers = #tpu.dot_dimension_numbers<[1], [0], [0], [1], [0, 0, 1, 1], [], []>} : vector<8x64xbf16>, vector<64x32xbf16>, vector<8x32xf32> -> vector<8x32xf32>
    %c2_103 = arith.constant 2 : index
    %c0_104 = arith.constant 0 : index
    %c0_105 = arith.constant 0 : index
    %210 = vector.load %arg13[%c2_103, %c0_104, %c0_105] : memref<4x1x32xf32, #tpu.memory_space<vmem>>, vector<1x1x32xf32>
    %211 = vector.shape_cast %210 : vector<1x1x32xf32> to vector<1x32xf32>
    %212 = vector.broadcast %211 : vector<1x32xf32> to vector<8x32xf32>
    %213 = arith.addf %209, %212 : vector<8x32xf32>
    %214 = arith.addf %147, %213 : vector<8x32xf32>
    %cst_106 = arith.constant dense<0.000000e+00> : vector<8xf32>
    %215 = vector.multi_reduction <add>, %214, %cst_106 [1] : vector<8x32xf32> to vector<8xf32>
    %216 = vector.shape_cast %215 : vector<8xf32> to vector<8x1xf32>
    %cst_107 = arith.constant 3.200000e+01 : f32
    %217 = vector.broadcast %cst_107 : f32 to vector<8x1xf32>
    %218 = arith.divf %216, %217 : vector<8x1xf32>
    %219 = vector.broadcast %218 : vector<8x1xf32> to vector<8x32xf32>
    %220 = arith.subf %214, %219 : vector<8x32xf32>
    %221 = arith.mulf %220, %220 : vector<8x32xf32>
    %cst_108 = arith.constant dense<0.000000e+00> : vector<8xf32>
    %222 = vector.multi_reduction <add>, %221, %cst_108 [1] : vector<8x32xf32> to vector<8xf32>
    %223 = vector.shape_cast %222 : vector<8xf32> to vector<8x1xf32>
    %cst_109 = arith.constant 3.200000e+01 : f32
    %224 = vector.broadcast %cst_109 : f32 to vector<8x1xf32>
    %225 = arith.divf %223, %224 : vector<8x1xf32>
    %226 = vector.broadcast %218 : vector<8x1xf32> to vector<8x32xf32>
    %227 = arith.subf %214, %226 : vector<8x32xf32>
    %cst_110 = arith.constant 9.99999974E-6 : f32
    %228 = vector.broadcast %cst_110 : f32 to vector<8x1xf32>
    %229 = arith.addf %225, %228 : vector<8x1xf32>
    %230 = math.rsqrt %229 : vector<8x1xf32>
    %231 = vector.broadcast %230 : vector<8x1xf32> to vector<8x32xf32>
    %232 = arith.mulf %227, %231 : vector<8x32xf32>
    %c3 = arith.constant 3 : index
    %c0_111 = arith.constant 0 : index
    %c0_112 = arith.constant 0 : index
    %233 = vector.load %arg5[%c3, %c0_111, %c0_112] : memref<4x1x32xf32, #tpu.memory_space<vmem>>, vector<1x1x32xf32>
    %234 = vector.shape_cast %233 : vector<1x1x32xf32> to vector<1x32xf32>
    %235 = vector.broadcast %234 : vector<1x32xf32> to vector<8x32xf32>
    %236 = arith.mulf %232, %235 : vector<8x32xf32>
    %c3_113 = arith.constant 3 : index
    %c0_114 = arith.constant 0 : index
    %c0_115 = arith.constant 0 : index
    %237 = vector.load %arg6[%c3_113, %c0_114, %c0_115] : memref<4x1x32xf32, #tpu.memory_space<vmem>>, vector<1x1x32xf32>
    %238 = vector.shape_cast %237 : vector<1x1x32xf32> to vector<1x32xf32>
    %239 = vector.broadcast %238 : vector<1x32xf32> to vector<8x32xf32>
    %240 = arith.addf %236, %239 : vector<8x32xf32>
    %241 = arith.negf %240 : vector<8x32xf32>
    %242 = math.exp %241 : vector<8x32xf32>
    %cst_116 = arith.constant 1.000000e+00 : f32
    %243 = vector.broadcast %cst_116 : f32 to vector<8x32xf32>
    %244 = arith.addf %243, %242 : vector<8x32xf32>
    %245 = arith.divf %243, %244 : vector<8x32xf32>
    %246 = arith.mulf %240, %245 : vector<8x32xf32>
    %247 = arith.truncf %246 : vector<8x32xf32> to vector<8x32xbf16>
    %c3_117 = arith.constant 3 : index
    %c0_118 = arith.constant 0 : index
    %c0_119 = arith.constant 0 : index
    %248 = vector.load %arg7[%c3_117, %c0_118, %c0_119] : memref<4x32x64xbf16, #tpu.memory_space<vmem>>, vector<1x32x64xbf16>
    %249 = vector.shape_cast %248 : vector<1x32x64xbf16> to vector<32x64xbf16>
    %cst_120 = arith.constant dense<0.000000e+00> : vector<8x64xf32>
    %250 = tpu.matmul %247, %249, %cst_120 {dimension_numbers = #tpu.dot_dimension_numbers<[1], [0], [0], [1], [0, 0, 1, 1], [], []>} : vector<8x32xbf16>, vector<32x64xbf16>, vector<8x64xf32> -> vector<8x64xf32>
    %251 = vector.extract_strided_slice %13 {offsets = [0, 192], sizes = [8, 64], strides = [1, 1]} : vector<8x256xf32> to vector<8x64xf32>
    %252 = arith.addf %250, %251 : vector<8x64xf32>
    %253 = arith.negf %252 : vector<8x64xf32>
    %254 = math.exp %253 : vector<8x64xf32>
    %cst_121 = arith.constant 1.000000e+00 : f32
    %255 = vector.broadcast %cst_121 : f32 to vector<8x64xf32>
    %256 = arith.addf %255, %254 : vector<8x64xf32>
    %257 = arith.divf %255, %256 : vector<8x64xf32>
    %258 = arith.mulf %252, %257 : vector<8x64xf32>
    %259 = arith.truncf %258 : vector<8x64xf32> to vector<8x64xbf16>
    %c3_122 = arith.constant 3 : index
    %c0_123 = arith.constant 0 : index
    %c0_124 = arith.constant 0 : index
    %260 = vector.load %arg10[%c3_122, %c0_123, %c0_124] : memref<4x64x64xbf16, #tpu.memory_space<vmem>>, vector<1x64x64xbf16>
    %261 = vector.shape_cast %260 : vector<1x64x64xbf16> to vector<64x64xbf16>
    %cst_125 = arith.constant dense<0.000000e+00> : vector<8x64xf32>
    %262 = tpu.matmul %259, %261, %cst_125 {dimension_numbers = #tpu.dot_dimension_numbers<[1], [0], [0], [1], [0, 0, 1, 1], [], []>} : vector<8x64xbf16>, vector<64x64xbf16>, vector<8x64xf32> -> vector<8x64xf32>
    %c3_126 = arith.constant 3 : index
    %c0_127 = arith.constant 0 : index
    %c0_128 = arith.constant 0 : index
    %263 = vector.load %arg11[%c3_126, %c0_127, %c0_128] : memref<4x1x64xf32, #tpu.memory_space<vmem>>, vector<1x1x64xf32>
    %264 = vector.shape_cast %263 : vector<1x1x64xf32> to vector<1x64xf32>
    %265 = vector.broadcast %264 : vector<1x64xf32> to vector<8x64xf32>
    %266 = arith.addf %262, %265 : vector<8x64xf32>
    %267 = arith.negf %266 : vector<8x64xf32>
    %268 = math.exp %267 : vector<8x64xf32>
    %cst_129 = arith.constant 1.000000e+00 : f32
    %269 = vector.broadcast %cst_129 : f32 to vector<8x64xf32>
    %270 = arith.addf %269, %268 : vector<8x64xf32>
    %271 = arith.divf %269, %270 : vector<8x64xf32>
    %272 = arith.mulf %266, %271 : vector<8x64xf32>
    %273 = arith.truncf %272 : vector<8x64xf32> to vector<8x64xbf16>
    %c3_130 = arith.constant 3 : index
    %c0_131 = arith.constant 0 : index
    %c0_132 = arith.constant 0 : index
    %274 = vector.load %arg12[%c3_130, %c0_131, %c0_132] : memref<4x64x32xbf16, #tpu.memory_space<vmem>>, vector<1x64x32xbf16>
    %275 = vector.shape_cast %274 : vector<1x64x32xbf16> to vector<64x32xbf16>
    %cst_133 = arith.constant dense<0.000000e+00> : vector<8x32xf32>
    %276 = tpu.matmul %273, %275, %cst_133 {dimension_numbers = #tpu.dot_dimension_numbers<[1], [0], [0], [1], [0, 0, 1, 1], [], []>} : vector<8x64xbf16>, vector<64x32xbf16>, vector<8x32xf32> -> vector<8x32xf32>
    %c3_134 = arith.constant 3 : index
    %c0_135 = arith.constant 0 : index
    %c0_136 = arith.constant 0 : index
    %277 = vector.load %arg13[%c3_134, %c0_135, %c0_136] : memref<4x1x32xf32, #tpu.memory_space<vmem>>, vector<1x1x32xf32>
    %278 = vector.shape_cast %277 : vector<1x1x32xf32> to vector<1x32xf32>
    %279 = vector.broadcast %278 : vector<1x32xf32> to vector<8x32xf32>
    %280 = arith.addf %276, %279 : vector<8x32xf32>
    %281 = arith.addf %214, %280 : vector<8x32xf32>
    %282 = arith.truncf %281 : vector<8x32xf32> to vector<8x32xbf16>
    %c0_137 = arith.constant 0 : index
    %c0_138 = arith.constant 0 : index
    %283 = vector.load %arg14[%c0_137, %c0_138] : memref<32x2xbf16, #tpu.memory_space<vmem>>, vector<32x2xbf16>
    %cst_139 = arith.constant dense<0.000000e+00> : vector<8x2xf32>
    %284 = tpu.matmul %282, %283, %cst_139 {dimension_numbers = #tpu.dot_dimension_numbers<[1], [0], [0], [1], [0, 0, 1, 1], [], []>} : vector<8x32xbf16>, vector<32x2xbf16>, vector<8x2xf32> -> vector<8x2xf32>
    %c0_140 = arith.constant 0 : index
    %c0_141 = arith.constant 0 : index
    %285 = vector.load %arg15[%c0_140, %c0_141] : memref<1x2xf32, #tpu.memory_space<vmem>>, vector<1x2xf32>
    %286 = vector.broadcast %285 : vector<1x2xf32> to vector<8x2xf32>
    %287 = arith.addf %284, %286 : vector<8x2xf32>
    %c0_142 = arith.constant 0 : index
    %c0_143 = arith.constant 0 : index
    %288 = vector.load %arg16[%c0_142, %c0_143] : memref<8x2xf32, #tpu.memory_space<vmem>>, vector<8x2xf32>
    tpu.vector_store %arg16[%c0_142, %c0_143], %287 {strides = array<i32>} : memref<8x2xf32, #tpu.memory_space<vmem>>, vector<8x2xf32>,
    return
  }
  func.func @transform_0(%arg0: i32) -> (i32, i32) {
    %c0_i32 = arith.constant 0 : i32
    %c0_i32_0 = arith.constant 0 : i32
    return %arg0, %c0_i32 : i32, i32
  }
  func.func @transform_1(%arg0: i32) -> (i32, i32) {
    %c0_i32 = arith.constant 0 : i32
    %c0_i32_0 = arith.constant 0 : i32
    return %arg0, %c0_i32 : i32, i32
  }
  func.func @transform_2(%arg0: i32) -> (i32, i32) {
    %c0_i32 = arith.constant 0 : i32
    %c0_i32_0 = arith.constant 0 : i32
    %c0_i32_1 = arith.constant 0 : i32
    return %c0_i32, %c0_i32_0 : i32, i32
  }
  func.func @transform_3(%arg0: i32) -> (i32, i32) {
    %c0_i32 = arith.constant 0 : i32
    %c0_i32_0 = arith.constant 0 : i32
    %c0_i32_1 = arith.constant 0 : i32
    return %c0_i32, %c0_i32_0 : i32, i32
  }
  func.func @transform_4(%arg0: i32) -> (i32, i32, i32) {
    %c0_i32 = arith.constant 0 : i32
    %c0_i32_0 = arith.constant 0 : i32
    %c0_i32_1 = arith.constant 0 : i32
    %c0_i32_2 = arith.constant 0 : i32
    return %c0_i32, %c0_i32_0, %c0_i32_1 : i32, i32, i32
  }
  func.func @transform_5(%arg0: i32) -> (i32, i32, i32) {
    %c0_i32 = arith.constant 0 : i32
    %c0_i32_0 = arith.constant 0 : i32
    %c0_i32_1 = arith.constant 0 : i32
    %c0_i32_2 = arith.constant 0 : i32
    return %c0_i32, %c0_i32_0, %c0_i32_1 : i32, i32, i32
  }
  func.func @transform_6(%arg0: i32) -> (i32, i32, i32) {
    %c0_i32 = arith.constant 0 : i32
    %c0_i32_0 = arith.constant 0 : i32
    %c0_i32_1 = arith.constant 0 : i32
    %c0_i32_2 = arith.constant 0 : i32
    return %c0_i32, %c0_i32_0, %c0_i32_1 : i32, i32, i32
  }
  func.func @transform_7(%arg0: i32) -> (i32, i32) {
    %c0_i32 = arith.constant 0 : i32
    %c0_i32_0 = arith.constant 0 : i32
    %c0_i32_1 = arith.constant 0 : i32
    return %c0_i32, %c0_i32_0 : i32, i32
  }
  func.func @transform_8(%arg0: i32) -> (i32, i32) {
    %c0_i32 = arith.constant 0 : i32
    %c0_i32_0 = arith.constant 0 : i32
    %c0_i32_1 = arith.constant 0 : i32
    return %c0_i32, %c0_i32_0 : i32, i32
  }
  func.func @transform_9(%arg0: i32) -> (i32, i32, i32) {
    %c0_i32 = arith.constant 0 : i32
    %c0_i32_0 = arith.constant 0 : i32
    %c0_i32_1 = arith.constant 0 : i32
    %c0_i32_2 = arith.constant 0 : i32
    return %c0_i32, %c0_i32_0, %c0_i32_1 : i32, i32, i32
  }
  func.func @transform_10(%arg0: i32) -> (i32, i32, i32) {
    %c0_i32 = arith.constant 0 : i32
    %c0_i32_0 = arith.constant 0 : i32
    %c0_i32_1 = arith.constant 0 : i32
    %c0_i32_2 = arith.constant 0 : i32
    return %c0_i32, %c0_i32_0, %c0_i32_1 : i32, i32, i32
  }
  func.func @transform_11(%arg0: i32) -> (i32, i32, i32) {
    %c0_i32 = arith.constant 0 : i32
    %c0_i32_0 = arith.constant 0 : i32
    %c0_i32_1 = arith.constant 0 : i32
    %c0_i32_2 = arith.constant 0 : i32
    return %c0_i32, %c0_i32_0, %c0_i32_1 : i32, i32, i32
  }
  func.func @transform_12(%arg0: i32) -> (i32, i32, i32) {
    %c0_i32 = arith.constant 0 : i32
    %c0_i32_0 = arith.constant 0 : i32
    %c0_i32_1 = arith.constant 0 : i32
    %c0_i32_2 = arith.constant 0 : i32
    return %c0_i32, %c0_i32_0, %c0_i32_1 : i32, i32, i32
  }
  func.func @transform_13(%arg0: i32) -> (i32, i32) {
    %c0_i32 = arith.constant 0 : i32
    %c0_i32_0 = arith.constant 0 : i32
    %c0_i32_1 = arith.constant 0 : i32
    return %c0_i32, %c0_i32_0 : i32, i32
  }
  func.func @transform_14(%arg0: i32) -> (i32, i32) {
    %c0_i32 = arith.constant 0 : i32
    %c0_i32_0 = arith.constant 0 : i32
    %c0_i32_1 = arith.constant 0 : i32
    return %c0_i32, %c0_i32_0 : i32, i32
  }
  func.func @transform_15(%arg0: i32) -> (i32, i32) {
    %c0_i32 = arith.constant 0 : i32
    %c0_i32_0 = arith.constant 0 : i32
    return %arg0, %c0_i32 : i32, i32
  }
}

</mosaic_0001>

<llo_original>
// kernel: tpu_custom_call.1
$region0: #{tpu_custom_call.1}
  #allocation0 [shape = 'u32[]', space=smem, size = 0x4, offset = 0x4, fixed_abs, tag = 'smem constant byte address 0x4 - core index']
  #allocation1 [shape = 'u32[144,128]{1,0:T(1,128)}', space=vmem, size = 0x12000, scoped, tag = 'internal scratch']
  %s0 = inlined_call_operand.vmem [shape: f32[8,2], index: 0, kind: input, shape index: {}]
  %s1 = inlined_call_operand.hbm [shape: f32[8,32], index: 1, kind: input, shape index: {}]
  %s2 = inlined_call_operand.hbm [shape: bf16[2,32], index: 2, kind: input, shape index: {}]
  %s3 = inlined_call_operand.hbm [shape: f32[1,32], index: 3, kind: input, shape index: {}]
  %s4 = inlined_call_operand.vmem [shape: f32[4,1,32], index: 4, kind: input, shape index: {}]
  %s5 = inlined_call_operand.hbm [shape: f32[4,1,32], index: 5, kind: input, shape index: {}]
  %s6 = inlined_call_operand.vmem [shape: bf16[4,32,64], index: 6, kind: input, shape index: {}]
  %s7 = inlined_call_operand.hbm [shape: bf16[32,256], index: 7, kind: input, shape index: {}]
  %s8 = inlined_call_operand.hbm [shape: f32[1,256], index: 8, kind: input, shape index: {}]
  %s9 = inlined_call_operand.vmem [shape: bf16[4,64,64], index: 9, kind: input, shape index: {}]
  %s10 = inlined_call_operand.hbm [shape: f32[4,1,64], index: 10, kind: input, shape index: {}]
  %s11 = inlined_call_operand.vmem [shape: bf16[4,64,32], index: 11, kind: input, shape index: {}]
  %s12 = inlined_call_operand.vmem [shape: f32[4,1,32], index: 12, kind: input, shape index: {}]
  %s13 = inlined_call_operand.vmem [shape: bf16[32,2], index: 13, kind: input, shape index: {}]
  %s14 = inlined_call_operand.vmem [shape: f32[1,2], index: 14, kind: input, shape index: {}]
  %s15 = inlined_call_operand.vmem [shape: f32[8,2], index: 15, kind: output, shape index: {}]
  %s16 = sld [smem:[#allocation0]]
  $region98: #{tpu_custom_call.1} parent=0
    _
  %s18 = ssub.s32 1, %s16
  %s19 = scalar_select 0, %s18, %s16
  $region1: #{tpu_custom_call.1} parent=0
    #allocation2 [shape = 'u8[4096]{0}', space=vmem, size = 0x1000, scoped, tag = 'input window, operand 1, single buffered']
    #allocation3 [shape = 's32[1]{0}', space=sflag, size = 0x4, scoped, tag = 'scoped memory for tpu_custom_call.1']
    #allocation4 [shape = 'u8[512]{0}', space=vmem, size = 0x400, scoped, tag = 'input window, operand 2, single buffered']
    #allocation5 [shape = 's32[1]{0}', space=sflag, size = 0x4, scoped, tag = 'scoped memory for tpu_custom_call.1']
    #allocation6 [shape = 'u8[512]{0}', space=vmem, size = 0x400, scoped, tag = 'input window, operand 3, single buffered']
    #allocation7 [shape = 'u8[2048]{0}', space=vmem, size = 0x800, scoped, tag = 'input window, operand 5, single buffered']
    #allocation8 [shape = 's32[1]{0}', space=sflag, size = 0x4, scoped, tag = 'scoped memory for tpu_custom_call.1']
    #allocation9 [shape = 'u8[16384]{0}', space=vmem, size = 0x4000, scoped, tag = 'input window, operand 7, single buffered']
    #allocation10 [shape = 'u8[1024]{0}', space=vmem, size = 0x400, scoped, tag = 'input window, operand 8, single buffered']
    #allocation11 [shape = 's32[1]{0}', space=sflag, size = 0x4, scoped, tag = 'scoped memory for tpu_custom_call.1']
    #allocation12 [shape = 'u8[2048]{0}', space=vmem, size = 0x800, scoped, tag = 'input window, operand 10, single buffered']
    %20 = vsyncpa [#allocation3], 0
    %21 = vsyncpa [#allocation5], 0
    %22 = vsyncpa [#allocation8], 0
    %23 = vsyncpa [#allocation11], 0
    // Predicated region
    $region2: #{tpu_custom_call.1} parent=1 // pred_check
      _
    $region3: #{tpu_custom_call.1} parent=1 // pred_check_branch
      %25 = sbr.rel (0) target = $region5
    $region4: #{tpu_custom_call.1} parent=1 // pred_region
      _
    $region5: #{tpu_custom_call.1} parent=1 // pred_fallthru
      _
    // Predicated region
    $region6: #{tpu_custom_call.1} parent=1 // pred_check
      _
    $region7: #{tpu_custom_call.1} parent=1 // pred_check_branch
      %27 = sbr.rel (0) target = $region9
    $region8: #{tpu_custom_call.1} parent=1 // pred_region
      %s29 = ssub.s32 128, 128
      %30 = vsyncadd [#allocation3], %s29
      %s32 = sshll.u32 [#allocation2], 4
      %s33 = int_to_ptr.vmem [resolvable:$true] %s32
      %35 = dma.hbm_to_vmem [thread:$0]  %s1, 128, %s33, [#allocation3]
    $region9: #{tpu_custom_call.1} parent=1 // pred_fallthru
      _
    // Predicated region
    $region10: #{tpu_custom_call.1} parent=1 // pred_check
      _
    $region11: #{tpu_custom_call.1} parent=1 // pred_check_branch
      %37 = sbr.rel (0) target = $region13
    $region12: #{tpu_custom_call.1} parent=1 // pred_region
      %s39 = ssub.s32 16, 16
      %40 = vsyncadd [#allocation5], %s39
      %s42 = sshll.u32 [#allocation4], 4
      %s43 = int_to_ptr.vmem [resolvable:$true] %s42
      %45 = dma.hbm_to_vmem [thread:$0]  %s2, 16, %s43, [#allocation5]
    $region13: #{tpu_custom_call.1} parent=1 // pred_fallthru
      _
    // Predicated region
    $region14: #{tpu_custom_call.1} parent=1 // pred_check
      _
    $region15: #{tpu_custom_call.1} parent=1 // pred_check_branch
      %47 = sbr.rel (0) target = $region17
    $region16: #{tpu_custom_call.1} parent=1 // pred_region
      %s49 = ssub.s32 16, 16
      %50 = vsyncadd [#allocation5], %s49
      %s52 = sshll.u32 [#allocation6], 4
      %s53 = int_to_ptr.vmem [resolvable:$true] %s52
      %55 = dma.hbm_to_vmem [thread:$0]  %s3, 16, %s53, [#allocation5]
    $region17: #{tpu_custom_call.1} parent=1 // pred_fallthru
      _
    // Predicated region
    $region18: #{tpu_custom_call.1} parent=1 // pred_check
      _
    $region19: #{tpu_custom_call.1} parent=1 // pred_check_branch
      %57 = sbr.rel (0) target = $region21
    $region20: #{tpu_custom_call.1} parent=1 // pred_region
      _
    $region21: #{tpu_custom_call.1} parent=1 // pred_fallthru
      _
    // Predicated region
    $region22: #{tpu_custom_call.1} parent=1 // pred_check
      _
    $region23: #{tpu_custom_call.1} parent=1 // pred_check_branch
      %59 = sbr.rel (0) target = $region25
    $region24: #{tpu_custom_call.1} parent=1 // pred_region
      %s61 = ssub.s32 64, 64
      %62 = vsyncadd [#allocation8], %s61
      %s63 = sshll.u32 [#allocation7], 4
      %s64 = int_to_ptr.vmem [resolvable:$true] %s63
      %69 = dma.hbm_to_vmem [thread:$0]  %s5, 64, %s64, [#allocation8], 16, 16, 1
    $region25: #{tpu_custom_call.1} parent=1 // pred_fallthru
      _
    // Predicated region
    $region26: #{tpu_custom_call.1} parent=1 // pred_check
      _
    $region27: #{tpu_custom_call.1} parent=1 // pred_check_branch
      %71 = sbr.rel (0) target = $region29
    $region28: #{tpu_custom_call.1} parent=1 // pred_region
      _
    $region29: #{tpu_custom_call.1} parent=1 // pred_fallthru
      _
    // Predicated region
    $region30: #{tpu_custom_call.1} parent=1 // pred_check
      _
    $region31: #{tpu_custom_call.1} parent=1 // pred_check_branch
      %73 = sbr.rel (0) target = $region33
    $region32: #{tpu_custom_call.1} parent=1 // pred_region
      %s75 = ssub.s32 512, 512
      %76 = vsyncadd [#allocation8], %s75
      %s77 = sshll.u32 [#allocation9], 4
      %s78 = int_to_ptr.vmem [resolvable:$true] %s77
      %83 = dma.hbm_to_vmem [thread:$0]  %s7, 512, %s78, [#allocation8], 128, 128, 8
    $region33: #{tpu_custom_call.1} parent=1 // pred_fallthru
      _
    // Predicated region
    $region34: #{tpu_custom_call.1} parent=1 // pred_check
      _
    $region35: #{tpu_custom_call.1} parent=1 // pred_check_branch
      %85 = sbr.rel (0) target = $region37
    $region36: #{tpu_custom_call.1} parent=1 // pred_region
      %s87 = ssub.s32 32, 32
      %88 = vsyncadd [#allocation11], %s87
      %s90 = sshll.u32 [#allocation10], 4
      %s91 = int_to_ptr.vmem [resolvable:$true] %s90
      %93 = dma.hbm_to_vmem [thread:$0]  %s8, 32, %s91, [#allocation11]
    $region37: #{tpu_custom_call.1} parent=1 // pred_fallthru
      _
    // Predicated region
    $region38: #{tpu_custom_call.1} parent=1 // pred_check
      _
    $region39: #{tpu_custom_call.1} parent=1 // pred_check_branch
      %95 = sbr.rel (0) target = $region41
    $region40: #{tpu_custom_call.1} parent=1 // pred_region
      _
    $region41: #{tpu_custom_call.1} parent=1 // pred_fallthru
      _
    // Predicated region
    $region42: #{tpu_custom_call.1} parent=1 // pred_check
      _
    $region43: #{tpu_custom_call.1} parent=1 // pred_check_branch
      %97 = sbr.rel (0) target = $region45
    $region44: #{tpu_custom_call.1} parent=1 // pred_region
      %s99 = ssub.s32 64, 64
      %100 = vsyncadd [#allocation11], %s99
      %s101 = sshll.u32 [#allocation12], 4
      %s102 = int_to_ptr.vmem [resolvable:$true] %s101
      %107 = dma.hbm_to_vmem [thread:$0]  %s10, 64, %s102, [#allocation11], 16, 16, 1
    $region45: #{tpu_custom_call.1} parent=1 // pred_fallthru
      _
    // Predicated region
    $region46: #{tpu_custom_call.1} parent=1 // pred_check
      _
    $region47: #{tpu_custom_call.1} parent=1 // pred_check_branch
      %109 = sbr.rel (0) target = $region49
    $region48: #{tpu_custom_call.1} parent=1 // pred_region
      _
    $region49: #{tpu_custom_call.1} parent=1 // pred_fallthru
      _
    // Predicated region
    $region50: #{tpu_custom_call.1} parent=1 // pred_check
      _
    $region51: #{tpu_custom_call.1} parent=1 // pred_check_branch
      %111 = sbr.rel (0) target = $region53
    $region52: #{tpu_custom_call.1} parent=1 // pred_region
      _
    $region53: #{tpu_custom_call.1} parent=1 // pred_fallthru
      _
    // Predicated region
    $region54: #{tpu_custom_call.1} parent=1 // pred_check
      _
    $region55: #{tpu_custom_call.1} parent=1 // pred_check_branch
      %113 = sbr.rel (0) target = $region57
    $region56: #{tpu_custom_call.1} parent=1 // pred_region
      _
    $region57: #{tpu_custom_call.1} parent=1 // pred_fallthru
      _
    // Predicated region
    $region58: #{tpu_custom_call.1} parent=1 // pred_check
      _
    $region59: #{tpu_custom_call.1} parent=1 // pred_check_branch
      %115 = sbr.rel (0) target = $region61
    $region60: #{tpu_custom_call.1} parent=1 // pred_region
      _
    $region61: #{tpu_custom_call.1} parent=1 // pred_fallthru
      _
    // Predicated region
    $region62: #{tpu_custom_call.1} parent=1 // pred_check
      _
    $region63: #{tpu_custom_call.1} parent=1 // pred_check_branch
      %117 = sbr.rel (0) target = $region65
    $region64: #{tpu_custom_call.1} parent=1 // pred_region
      %118 = dma.done [#allocation3], 128
    $region65: #{tpu_custom_call.1} parent=1 // pred_fallthru
      _
    // Predicated region
    $region66: #{tpu_custom_call.1} parent=1 // pred_check
      _
    $region67: #{tpu_custom_call.1} parent=1 // pred_check_branch
      %120 = sbr.rel (0) target = $region69
    $region68: #{tpu_custom_call.1} parent=1 // pred_region
      %121 = dma.done [#allocation5], 16
    $region69: #{tpu_custom_call.1} parent=1 // pred_fallthru
      _
    // Predicated region
    $region70: #{tpu_custom_call.1} parent=1 // pred_check
      _
    $region71: #{tpu_custom_call.1} parent=1 // pred_check_branch
      %123 = sbr.rel (0) target = $region73
    $region72: #{tpu_custom_call.1} parent=1 // pred_region
      %124 = dma.done [#allocation5], 16
    $region73: #{tpu_custom_call.1} parent=1 // pred_fallthru
      _
    // Predicated region
    $region74: #{tpu_custom_call.1} parent=1 // pred_check
      _
    $region75: #{tpu_custom_call.1} parent=1 // pred_check_branch
      %126 = sbr.rel (0) target = $region77
    $region76: #{tpu_custom_call.1} parent=1 // pred_region
      %127 = dma.done [#allocation8], 64
    $region77: #{tpu_custom_call.1} parent=1 // pred_fallthru
      _
    // Predicated region
    $region78: #{tpu_custom_call.1} parent=1 // pred_check
      _
    $region79: #{tpu_custom_call.1} parent=1 // pred_check_branch
      %129 = sbr.rel (0) target = $region81
    $region80: #{tpu_custom_call.1} parent=1 // pred_region
      %130 = dma.done [#allocation8], 512
    $region81: #{tpu_custom_call.1} parent=1 // pred_fallthru
      _
    // Predicated region
    $region82: #{tpu_custom_call.1} parent=1 // pred_check
      _
    $region83: #{tpu_custom_call.1} parent=1 // pred_check_branch
      %132 = sbr.rel (0) target = $region85
    $region84: #{tpu_custom_call.1} parent=1 // pred_region
      %133 = dma.done [#allocation11], 32
    $region85: #{tpu_custom_call.1} parent=1 // pred_fallthru
      _
    // Predicated region
    $region86: #{tpu_custom_call.1} parent=1 // pred_check
      _
    $region87: #{tpu_custom_call.1} parent=1 // pred_check_branch
      %135 = sbr.rel (0) target = $region89
    $region88: #{tpu_custom_call.1} parent=1 // pred_region
      %136 = dma.done [#allocation11], 64
    $region89: #{tpu_custom_call.1} parent=1 // pred_fallthru
      _
    %v138 = vld [vmem:[%s0] sm:$0xff]
    %v139 = vpack.c.bf16 %v138, %v138
    %v140 = vld [vmem:[#allocation2] sm:$0xff]
    %v141 = vpack.c.bf16 %v140, %v140
    %v142 = vld [vmem:[#allocation4] sm:$0x1]
    %v143 = vld [vmem:[#allocation6] sm:$0x1]
    %v145 = vlaneseq
    %v146 = vshrl.u32 %v145, 7
    %v147 = vsub.s32 0, %v146
    %v148 = vrot.slane %v143, %v147
    %vm150 = vcmask 15360
    %v152 = vsel %vm150, %v139, 0
    %vm154 = vcmask 1040384
    %v156 = vsel %vm154, %v142, 0
    %158 = vmatprep.subr.bf16.mxu0 0
    %159 = vmatpush1.bf16.msra.mxu0 %v156
    %160 = vmatprep.subr.bf16.mxu0 0
    %161 = vmatpush1.bf16.msra.mxu0 0
    %162 = vmatprep.subr.bf16.mxu0 0
    %163 = vmatpush1.bf16.msra.mxu0 0
    %164 = vmatprep.subr.bf16.mxu0 0
    %165 = vmatpush1.bf16.msra.mxu0 0
    %166 = vmatprep.subr.bf16.mxu0 0
    %167 = vmatpush1.bf16.msra.mxu0 0
    %168 = vmatprep.subr.bf16.mxu0 0
    %169 = vmatpush1.bf16.msra.mxu0 0
    %170 = vmatprep.subr.bf16.mxu0 0
    %171 = vmatpush1.bf16.msra.mxu0 0
    %172 = vmatprep.subr.bf16.mxu0 0
    %173 = vmatpush1.bf16.msra.mxu0 0
    %174 = vmatprep.subr.bf16.mxu0 0
    %175 = vmatpush1.bf16.msra.mxu0 0
    %176 = vmatprep.subr.bf16.mxu0 0
    %177 = vmatpush1.bf16.msra.mxu0 0
    %178 = vmatprep.subr.bf16.mxu0 0
    %179 = vmatpush1.bf16.msra.mxu0 0
    %180 = vmatprep.subr.bf16.mxu0 0
    %181 = vmatpush1.bf16.msra.mxu0 0
    %182 = vmatprep.subr.bf16.mxu0 0
    %183 = vmatpush1.bf16.msra.mxu0 0
    %184 = vmatprep.subr.bf16.mxu0 0
    %185 = vmatpush1.bf16.msra.mxu0 0
    %186 = vmatprep.subr.bf16.mxu0 0
    %187 = vmatpush1.bf16.msra.mxu0 0
    %188 = vmatprep.subr.bf16.mxu0 0
    %189 = vmatpush1.bf16.msra.mxu0 0
    %190 = vmatprep.mubr.bf16.mxu0 0
    %191 = vmatmul.mubr.bf16.gmra.mrb[0].mxu0 %v152
    %v192 = vpop.f32.mrb[0].mxu0
    %v193 = vadd.f32 %v148, %v192
    %v194 = vpop.f32.mrb[0].mxu0
    %v195 = vpop.f32.mrb[0].mxu0
    %v196 = vpop.f32.mrb[0].mxu0
    %197 = vdwg.mxu0
    %v198 = vld [vmem:[#allocation9] sm:$0xff]
    %v199 = vld [vmem:[#allocation9 + $0x8] sm:$0xff]
    %v200 = vld [vmem:[#allocation9 + $0x10] sm:$0xff]
    %v201 = vld [vmem:[#allocation9 + $0x18] sm:$0xff]
    %v202 = vld [vmem:[#allocation10] sm:$0x3]
    %v204 = vlaneseq
    %v205 = vshrl.u32 %v204, 7
    %v206 = vsub.s32 0, %v205
    %v207 = vrot.slane %v202, %v206
    %v208 = vlaneseq
    %v209 = vshrl.u32 %v208, 7
    %v210 = vsub.s32 1, %v209
    %v211 = vrot.slane %v202, %v210
    %v218 = vunpack.c.l.b16 %v198
    %v219 = vunpack.c.h.b16 %v198
    %v220 = vunpack.c.l.b16 %v199
    %v221 = vunpack.c.h.b16 %v199
    %v222 = vunpack.c.l.b16 %v200
    %v223 = vunpack.c.h.b16 %v200
    %v224 = vunpack.c.l.b16 %v201
    %v225 = vunpack.c.h.b16 %v201
    %v226 = vpack.c.b16 %v220, %v218
    %v227 = vpack.c.b16 %v221, %v219
    %v228 = vpack.c.b16 %v224, %v222
    %v229 = vpack.c.b16 %v225, %v223
    %vm234 = vcmask 261120
    %v236 = vsel %vm234, %v141, 0
    %238 = vmatprep.subr.bf16.mxu0 %v227
    %239 = vmatpush1.bf16.msra.mxu0 %v226
    %240 = vmatprep.subr.bf16.mxu0 %v229
    %241 = vmatpush1.bf16.msra.mxu0 %v228
    %242 = vmatprep.subr.bf16.mxu0 0
    %243 = vmatpush1.bf16.msra.mxu0 0
    %244 = vmatprep.subr.bf16.mxu0 0
    %245 = vmatpush1.bf16.msra.mxu0 0
    %246 = vmatprep.subr.bf16.mxu0 0
    %247 = vmatpush1.bf16.msra.mxu0 0
    %248 = vmatprep.subr.bf16.mxu0 0
    %249 = vmatpush1.bf16.msra.mxu0 0
    %250 = vmatprep.subr.bf16.mxu0 0
    %251 = vmatpush1.bf16.msra.mxu0 0
    %252 = vmatprep.subr.bf16.mxu0 0
    %253 = vmatpush1.bf16.msra.mxu0 0
    %254 = vmatprep.subr.bf16.mxu0 0
    %255 = vmatpush1.bf16.msra.mxu0 0
    %256 = vmatprep.subr.bf16.mxu0 0
    %257 = vmatpush1.bf16.msra.mxu0 0
    %258 = vmatprep.subr.bf16.mxu0 0
    %259 = vmatpush1.bf16.msra.mxu0 0
    %260 = vmatprep.subr.bf16.mxu0 0
    %261 = vmatpush1.bf16.msra.mxu0 0
    %262 = vmatprep.subr.bf16.mxu0 0
    %263 = vmatpush1.bf16.msra.mxu0 0
    %264 = vmatprep.subr.bf16.mxu0 0
    %265 = vmatpush1.bf16.msra.mxu0 0
    %266 = vmatprep.subr.bf16.mxu0 0
    %267 = vmatpush1.bf16.msra.mxu0 0
    %268 = vmatprep.subr.bf16.mxu0 0
    %269 = vmatpush1.bf16.msra.mxu0 0
    %270 = vmatprep.mubr.bf16.mxu0 0
    %271 = vmatmul.mubr.bf16.gmra.mrb[0].mxu0 %v236
    %v272 = vpop.f32.mrb[0].mxu0
    %v273 = vadd.f32 %v207, %v272
    %v274 = vpop.f32.mrb[0].mxu0
    %v275 = vadd.f32 %v211, %v274
    %v276 = vpop.f32.mrb[0].mxu0
    %v277 = vpop.f32.mrb[0].mxu0
    %278 = vdwg.mxu0
    %v279 = vsel %vm234, %v193, 0.0
    %280 = vadd.xlane.f32.xlu0 %v279
    %v281 = vpop.xlane.xlu0 %280
    %v282 = vrcp.pop 32.0
    %v283 = vmul.f32 %v281, %v282
    %v284 = vsub.f32 %v193, %v283
    %v285 = vmul.f32 %v284, %v284
    %v286 = vsel %vm234, %v285, 0.0
    %287 = vadd.xlane.f32.xlu0 %v286
    %v288 = vpop.xlane.xlu0 %287
    %v289 = vmul.f32 %v288, %v282
    %v290 = vadd.f32 %v289, 1e-05
    %v291 = vrsqrt.pop %v290
    %v292 = vmul.f32 %v284, %v291
    %v293 = vld [vmem:[%s4] sm:$0x1]
    %v295 = vlaneseq
    %v296 = vshrl.u32 %v295, 7
    %v297 = vsub.s32 0, %v296
    %v298 = vrot.slane %v293, %v297
    %v300 = vmul.f32 %v292, %v298
    %v301 = vld [vmem:[#allocation7] sm:$0x1]
    %v303 = vlaneseq
    %v304 = vshrl.u32 %v303, 7
    %v305 = vsub.s32 0, %v304
    %v306 = vrot.slane %v301, %v305
    %v308 = vadd.f32 %v300, %v306
    %v309 = vxor.u32 %v308, 2147483648
    %v310 = vmul.f32 %v309, 1.442695
    %v311 = vpow.pop %v310
    %v312 = vadd.f32 %v311, 1.0
    %v313 = vrcp.pop %v312
    %v314 = vmul.f32 1.0, %v313
    %v315 = vmul.f32 %v308, %v314
    %v316 = vpack.c.bf16 %v315, %v315
    %v317 = vld [vmem:[%s6] sm:$0xf]
    %v318 = vld [vmem:[%s6 + $0x4] sm:$0xf]
    %v319 = vld [vmem:[%s6 + $0x8] sm:$0xf]
    %v320 = vld [vmem:[%s6 + $0xc] sm:$0xf]
    %v325 = vunpack.c.l.b16 %v317
    %v326 = vunpack.c.l.b16 %v318
    %v327 = vunpack.c.l.b16 %v319
    %v328 = vunpack.c.l.b16 %v320
    %v329 = vpack.c.b16 %v326, %v325
    %v330 = vpack.c.b16 %v328, %v327
    %v334 = vsel %vm234, %v316, 0
    %336 = vmatprep.subr.bf16.mxu0 0
    %337 = vmatpush1.bf16.msra.mxu0 %v329
    %338 = vmatprep.subr.bf16.mxu0 0
    %339 = vmatpush1.bf16.msra.mxu0 %v330
    %340 = vmatprep.subr.bf16.mxu0 0
    %341 = vmatpush1.bf16.msra.mxu0 0
    %342 = vmatprep.subr.bf16.mxu0 0
    %343 = vmatpush1.bf16.msra.mxu0 0
    %344 = vmatprep.subr.bf16.mxu0 0
    %345 = vmatpush1.bf16.msra.mxu0 0
    %346 = vmatprep.subr.bf16.mxu0 0
    %347 = vmatpush1.bf16.msra.mxu0 0
    %348 = vmatprep.subr.bf16.mxu0 0
    %349 = vmatpush1.bf16.msra.mxu0 0
    %350 = vmatprep.subr.bf16.mxu0 0
    %351 = vmatpush1.bf16.msra.mxu0 0
    %352 = vmatprep.subr.bf16.mxu0 0
    %353 = vmatpush1.bf16.msra.mxu0 0
    %354 = vmatprep.subr.bf16.mxu0 0
    %355 = vmatpush1.bf16.msra.mxu0 0
    %356 = vmatprep.subr.bf16.mxu0 0
    %357 = vmatpush1.bf16.msra.mxu0 0
    %358 = vmatprep.subr.bf16.mxu0 0
    %359 = vmatpush1.bf16.msra.mxu0 0
    %360 = vmatprep.subr.bf16.mxu0 0
    %361 = vmatpush1.bf16.msra.mxu0 0
    %362 = vmatprep.subr.bf16.mxu0 0
    %363 = vmatpush1.bf16.msra.mxu0 0
    %364 = vmatprep.subr.bf16.mxu0 0
    %365 = vmatpush1.bf16.msra.mxu0 0
    %366 = vmatprep.subr.bf16.mxu0 0
    %367 = vmatpush1.bf16.msra.mxu0 0
    %368 = vmatprep.mubr.bf16.mxu0 0
    %369 = vmatmul.mubr.bf16.gmra.mrb[0].mxu0 %v334
    %v370 = vpop.f32.mrb[0].mxu0
    %v371 = vadd.f32 %v273, %v370
    %v372 = vpop.f32.mrb[0].mxu0
    %v373 = vpop.f32.mrb[0].mxu0
    %v374 = vpop.f32.mrb[0].mxu0
    %375 = vdwg.mxu0
    %v376 = vxor.u32 %v371, 2147483648
    %v377 = vmul.f32 %v376, 1.442695
    %v378 = vpow.pop %v377
    %v379 = vadd.f32 %v378, 1.0
    %v380 = vrcp.pop %v379
    %v381 = vmul.f32 1.0, %v380
    %v382 = vmul.f32 %v371, %v381
    %v383 = vpack.c.bf16 %v382, %v382
    %v384 = vld [vmem:[%s9] sm:$0xf]
    %v385 = vld [vmem:[%s9 + $0x4] sm:$0xf]
    %v386 = vld [vmem:[%s9 + $0x8] sm:$0xf]
    %v387 = vld [vmem:[%s9 + $0xc] sm:$0xf]
    %v388 = vld [vmem:[%s9 + $0x10] sm:$0xf]
    %v389 = vld [vmem:[%s9 + $0x14] sm:$0xf]
    %v390 = vld [vmem:[%s9 + $0x18] sm:$0xf]
    %v391 = vld [vmem:[%s9 + $0x1c] sm:$0xf]
    %v392 = vld [vmem:[#allocation12] sm:$0x1]
    %v394 = vlaneseq
    %v395 = vshrl.u32 %v394, 7
    %v396 = vsub.s32 0, %v395
    %v397 = vrot.slane %v392, %v396
    %v407 = vunpack.c.l.b16 %v384
    %v408 = vunpack.c.l.b16 %v385
    %v409 = vunpack.c.l.b16 %v386
    %v410 = vunpack.c.l.b16 %v387
    %v411 = vunpack.c.l.b16 %v388
    %v412 = vunpack.c.l.b16 %v389
    %v413 = vunpack.c.l.b16 %v390
    %v414 = vunpack.c.l.b16 %v391
    %v415 = vpack.c.b16 %v408, %v407
    %v416 = vpack.c.b16 %v410, %v409
    %v417 = vpack.c.b16 %v412, %v411
    %v418 = vpack.c.b16 %v414, %v413
    %vm423 = vcmask 523264
    %v425 = vsel %vm423, %v383, 0
    %427 = vmatprep.subr.bf16.mxu0 0
    %428 = vmatpush1.bf16.msra.mxu0 %v415
    %429 = vmatprep.subr.bf16.mxu0 0
    %430 = vmatpush1.bf16.msra.mxu0 %v416
    %431 = vmatprep.subr.bf16.mxu0 0
    %432 = vmatpush1.bf16.msra.mxu0 %v417
    %433 = vmatprep.subr.bf16.mxu0 0
    %434 = vmatpush1.bf16.msra.mxu0 %v418
    %435 = vmatprep.subr.bf16.mxu0 0
    %436 = vmatpush1.bf16.msra.mxu0 0
    %437 = vmatprep.subr.bf16.mxu0 0
    %438 = vmatpush1.bf16.msra.mxu0 0
    %439 = vmatprep.subr.bf16.mxu0 0
    %440 = vmatpush1.bf16.msra.mxu0 0
    %441 = vmatprep.subr.bf16.mxu0 0
    %442 = vmatpush1.bf16.msra.mxu0 0
    %443 = vmatprep.subr.bf16.mxu0 0
    %444 = vmatpush1.bf16.msra.mxu0 0
    %445 = vmatprep.subr.bf16.mxu0 0
    %446 = vmatpush1.bf16.msra.mxu0 0
    %447 = vmatprep.subr.bf16.mxu0 0
    %448 = vmatpush1.bf16.msra.mxu0 0
    %449 = vmatprep.subr.bf16.mxu0 0
    %450 = vmatpush1.bf16.msra.mxu0 0
    %451 = vmatprep.subr.bf16.mxu0 0
    %452 = vmatpush1.bf16.msra.mxu0 0
    %453 = vmatprep.subr.bf16.mxu0 0
    %454 = vmatpush1.bf16.msra.mxu0 0
    %455 = vmatprep.subr.bf16.mxu0 0
    %456 = vmatpush1.bf16.msra.mxu0 0
    %457 = vmatprep.subr.bf16.mxu0 0
    %458 = vmatpush1.bf16.msra.mxu0 0
    %459 = vmatprep.mubr.bf16.mxu0 0
    %460 = vmatmul.mubr.bf16.gmra.mrb[0].mxu0 %v425
    %v461 = vpop.f32.mrb[0].mxu0
    %v462 = vadd.f32 %v397, %v461
    %v463 = vpop.f32.mrb[0].mxu0
    %v464 = vpop.f32.mrb[0].mxu0
    %v465 = vpop.f32.mrb[0].mxu0
    %466 = vdwg.mxu0
    %v467 = vxor.u32 %v462, 2147483648
    %v468 = vmul.f32 %v467, 1.442695
    %v469 = vpow.pop %v468
    %v470 = vadd.f32 %v469, 1.0
    %v471 = vrcp.pop %v470
    %v472 = vmul.f32 1.0, %v471
    %v473 = vmul.f32 %v462, %v472
    %v474 = vpack.c.bf16 %v473, %v473
    %v475 = vld [vmem:[%s11] sm:$0xf]
    %v476 = vld [vmem:[%s11 + $0x4] sm:$0xf]
    %v477 = vld [vmem:[%s11 + $0x8] sm:$0xf]
    %v478 = vld [vmem:[%s11 + $0xc] sm:$0xf]
    %v479 = vld [vmem:[%s11 + $0x10] sm:$0xf]
    %v480 = vld [vmem:[%s11 + $0x14] sm:$0xf]
    %v481 = vld [vmem:[%s11 + $0x18] sm:$0xf]
    %v482 = vld [vmem:[%s11 + $0x1c] sm:$0xf]
    %v483 = vld [vmem:[%s12] sm:$0x1]
    %v485 = vlaneseq
    %v486 = vshrl.u32 %v485, 7
    %v487 = vsub.s32 0, %v486
    %v488 = vrot.slane %v483, %v487
    %v498 = vunpack.c.l.b16 %v475
    %v499 = vunpack.c.l.b16 %v476
    %v500 = vunpack.c.l.b16 %v477
    %v501 = vunpack.c.l.b16 %v478
    %v502 = vunpack.c.l.b16 %v479
    %v503 = vunpack.c.l.b16 %v480
    %v504 = vunpack.c.l.b16 %v481
    %v505 = vunpack.c.l.b16 %v482
    %v506 = vpack.c.b16 %v499, %v498
    %v507 = vpack.c.b16 %v501, %v500
    %v508 = vpack.c.b16 %v503, %v502
    %v509 = vpack.c.b16 %v505, %v504
    %v515 = vsel %vm423, %v474, 0
    %517 = vmatprep.subr.bf16.mxu0 0
    %518 = vmatpush1.bf16.msra.mxu0 %v506
    %519 = vmatprep.subr.bf16.mxu0 0
    %520 = vmatpush1.bf16.msra.mxu0 %v507
    %521 = vmatprep.subr.bf16.mxu0 0
    %522 = vmatpush1.bf16.msra.mxu0 %v508
    %523 = vmatprep.subr.bf16.mxu0 0
    %524 = vmatpush1.bf16.msra.mxu0 %v509
    %525 = vmatprep.subr.bf16.mxu0 0
    %526 = vmatpush1.bf16.msra.mxu0 0
    %527 = vmatprep.subr.bf16.mxu0 0
    %528 = vmatpush1.bf16.msra.mxu0 0
    %529 = vmatprep.subr.bf16.mxu0 0
    %530 = vmatpush1.bf16.msra.mxu0 0
    %531 = vmatprep.subr.bf16.mxu0 0
    %532 = vmatpush1.bf16.msra.mxu0 0
    %533 = vmatprep.subr.bf16.mxu0 0
    %534 = vmatpush1.bf16.msra.mxu0 0
    %535 = vmatprep.subr.bf16.mxu0 0
    %536 = vmatpush1.bf16.msra.mxu0 0
    %537 = vmatprep.subr.bf16.mxu0 0
    %538 = vmatpush1.bf16.msra.mxu0 0
    %539 = vmatprep.subr.bf16.mxu0 0
    %540 = vmatpush1.bf16.msra.mxu0 0
    %541 = vmatprep.subr.bf16.mxu0 0
    %542 = vmatpush1.bf16.msra.mxu0 0
    %543 = vmatprep.subr.bf16.mxu0 0
    %544 = vmatpush1.bf16.msra.mxu0 0
    %545 = vmatprep.subr.bf16.mxu0 0
    %546 = vmatpush1.bf16.msra.mxu0 0
    %547 = vmatprep.subr.bf16.mxu0 0
    %548 = vmatpush1.bf16.msra.mxu0 0
    %549 = vmatprep.mubr.bf16.mxu0 0
    %550 = vmatmul.mubr.bf16.gmra.mrb[0].mxu0 %v515
    %v551 = vpop.f32.mrb[0].mxu0
    %v552 = vadd.f32 %v488, %v551
    %v553 = vpop.f32.mrb[0].mxu0
    %v554 = vpop.f32.mrb[0].mxu0
    %v555 = vpop.f32.mrb[0].mxu0
    %556 = vdwg.mxu0
    %v557 = vadd.f32 %v193, %v552
    %v558 = vsel %vm234, %v557, 0.0
    %559 = vadd.xlane.f32.xlu0 %v558
    %v560 = vpop.xlane.xlu0 %559
    %v561 = vmul.f32 %v560, %v282
    %v562 = vsub.f32 %v557, %v561
    %v563 = vmul.f32 %v562, %v562
    %v564 = vsel %vm234, %v563, 0.0
    %565 = vadd.xlane.f32.xlu0 %v564
    %v566 = vpop.xlane.xlu0 %565
    %v567 = vmul.f32 %v566, %v282
    %v568 = vadd.f32 %v567, 1e-05
    %v569 = vrsqrt.pop %v568
    %v570 = vmul.f32 %v562, %v569
    %s571 = scalar_lea.vmem %s4, 1
    %v572 = vld [vmem:[%s571] sm:$0x1]
    %v574 = vlaneseq
    %v575 = vshrl.u32 %v574, 7
    %v576 = vsub.s32 0, %v575
    %v577 = vrot.slane %v572, %v576
    %v579 = vmul.f32 %v570, %v577
    %s580 = scalar_lea.vmem [#allocation7], 1
    %v581 = vld [vmem:[%s580] sm:$0x1]
    %v583 = vlaneseq
    %v584 = vshrl.u32 %v583, 7
    %v585 = vsub.s32 0, %v584
    %v586 = vrot.slane %v581, %v585
    %v588 = vadd.f32 %v579, %v586
    %v589 = vxor.u32 %v588, 2147483648
    %v590 = vmul.f32 %v589, 1.442695
    %v591 = vpow.pop %v590
    %v592 = vadd.f32 %v591, 1.0
    %v593 = vrcp.pop %v592
    %v594 = vmul.f32 1.0, %v593
    %v595 = vmul.f32 %v588, %v594
    %v596 = vpack.c.bf16 %v595, %v595
    %s597 = scalar_lea.vmem %s6, 16
    %v598 = vld [vmem:[%s597] sm:$0xf]
    %v599 = vld [vmem:[%s597 + $0x4] sm:$0xf]
    %v600 = vld [vmem:[%s597 + $0x8] sm:$0xf]
    %v601 = vld [vmem:[%s597 + $0xc] sm:$0xf]
    %v606 = vunpack.c.l.b16 %v598
    %v607 = vunpack.c.l.b16 %v599
    %v608 = vunpack.c.l.b16 %v600
    %v609 = vunpack.c.l.b16 %v601
    %v610 = vpack.c.b16 %v607, %v606
    %v611 = vpack.c.b16 %v609, %v608
    %615 = vrot.lane.b32.xlu0 %v273, 64
    %v616 = vpop.permute.xlu0 %615
    %v619 = vsel %vm234, %v596, 0
    %621 = vmatprep.subr.bf16.mxu0 0
    %622 = vmatpush1.bf16.msra.mxu0 %v610
    %623 = vmatprep.subr.bf16.mxu0 0
    %624 = vmatpush1.bf16.msra.mxu0 %v611
    %625 = vmatprep.subr.bf16.mxu0 0
    %626 = vmatpush1.bf16.msra.mxu0 0
    %627 = vmatprep.subr.bf16.mxu0 0
    %628 = vmatpush1.bf16.msra.mxu0 0
    %629 = vmatprep.subr.bf16.mxu0 0
    %630 = vmatpush1.bf16.msra.mxu0 0
    %631 = vmatprep.subr.bf16.mxu0 0
    %632 = vmatpush1.bf16.msra.mxu0 0
    %633 = vmatprep.subr.bf16.mxu0 0
    %634 = vmatpush1.bf16.msra.mxu0 0
    %635 = vmatprep.subr.bf16.mxu0 0
    %636 = vmatpush1.bf16.msra.mxu0 0
    %637 = vmatprep.subr.bf16.mxu0 0
    %638 = vmatpush1.bf16.msra.mxu0 0
    %639 = vmatprep.subr.bf16.mxu0 0
    %640 = vmatpush1.bf16.msra.mxu0 0
    %641 = vmatprep.subr.bf16.mxu0 0
    %642 = vmatpush1.bf16.msra.mxu0 0
    %643 = vmatprep.subr.bf16.mxu0 0
    %644 = vmatpush1.bf16.msra.mxu0 0
    %645 = vmatprep.subr.bf16.mxu0 0
    %646 = vmatpush1.bf16.msra.mxu0 0
    %647 = vmatprep.subr.bf16.mxu0 0
    %648 = vmatpush1.bf16.msra.mxu0 0
    %649 = vmatprep.subr.bf16.mxu0 0
    %650 = vmatpush1.bf16.msra.mxu0 0
    %651 = vmatprep.subr.bf16.mxu0 0
    %652 = vmatpush1.bf16.msra.mxu0 0
    %653 = vmatprep.mubr.bf16.mxu0 0
    %654 = vmatmul.mubr.bf16.gmra.mrb[0].mxu0 %v619
    %v655 = vpop.f32.mrb[0].mxu0
    %v656 = vadd.f32 %v616, %v655
    %v657 = vpop.f32.mrb[0].mxu0
    %v658 = vpop.f32.mrb[0].mxu0
    %v659 = vpop.f32.mrb[0].mxu0
    %660 = vdwg.mxu0
    %v661 = vxor.u32 %v656, 2147483648
    %v662 = vmul.f32 %v661, 1.442695
    %v663 = vpow.pop %v662
    %v664 = vadd.f32 %v663, 1.0
    %v665 = vrcp.pop %v664
    %v666 = vmul.f32 1.0, %v665
    %v667 = vmul.f32 %v656, %v666
    %v668 = vpack.c.bf16 %v667, %v667
    %s669 = scalar_lea.vmem %s9, 32
    %v670 = vld [vmem:[%s669] sm:$0xf]
    %v671 = vld [vmem:[%s669 + $0x4] sm:$0xf]
    %v672 = vld [vmem:[%s669 + $0x8] sm:$0xf]
    %v673 = vld [vmem:[%s669 + $0xc] sm:$0xf]
    %v674 = vld [vmem:[%s669 + $0x10] sm:$0xf]
    %v675 = vld [vmem:[%s669 + $0x14] sm:$0xf]
    %v676 = vld [vmem:[%s669 + $0x18] sm:$0xf]
    %v677 = vld [vmem:[%s669 + $0x1c] sm:$0xf]
    %s678 = scalar_lea.vmem [#allocation12], 1
    %v679 = vld [vmem:[%s678] sm:$0x1]
    %v681 = vlaneseq
    %v682 = vshrl.u32 %v681, 7
    %v683 = vsub.s32 0, %v682
    %v684 = vrot.slane %v679, %v683
    %v694 = vunpack.c.l.b16 %v670
    %v695 = vunpack.c.l.b16 %v671
    %v696 = vunpack.c.l.b16 %v672
    %v697 = vunpack.c.l.b16 %v673
    %v698 = vunpack.c.l.b16 %v674
    %v699 = vunpack.c.l.b16 %v675
    %v700 = vunpack.c.l.b16 %v676
    %v701 = vunpack.c.l.b16 %v677
    %v702 = vpack.c.b16 %v695, %v694
    %v703 = vpack.c.b16 %v697, %v696
    %v704 = vpack.c.b16 %v699, %v698
    %v705 = vpack.c.b16 %v701, %v700
    %v711 = vsel %vm423, %v668, 0
    %713 = vmatprep.subr.bf16.mxu0 0
    %714 = vmatpush1.bf16.msra.mxu0 %v702
    %715 = vmatprep.subr.bf16.mxu0 0
    %716 = vmatpush1.bf16.msra.mxu0 %v703
    %717 = vmatprep.subr.bf16.mxu0 0
    %718 = vmatpush1.bf16.msra.mxu0 %v704
    %719 = vmatprep.subr.bf16.mxu0 0
    %720 = vmatpush1.bf16.msra.mxu0 %v705
    %721 = vmatprep.subr.bf16.mxu0 0
    %722 = vmatpush1.bf16.msra.mxu0 0
    %723 = vmatprep.subr.bf16.mxu0 0
    %724 = vmatpush1.bf16.msra.mxu0 0
    %725 = vmatprep.subr.bf16.mxu0 0
    %726 = vmatpush1.bf16.msra.mxu0 0
    %727 = vmatprep.subr.bf16.mxu0 0
    %728 = vmatpush1.bf16.msra.mxu0 0
    %729 = vmatprep.subr.bf16.mxu0 0
    %730 = vmatpush1.bf16.msra.mxu0 0
    %731 = vmatprep.subr.bf16.mxu0 0
    %732 = vmatpush1.bf16.msra.mxu0 0
    %733 = vmatprep.subr.bf16.mxu0 0
    %734 = vmatpush1.bf16.msra.mxu0 0
    %735 = vmatprep.subr.bf16.mxu0 0
    %736 = vmatpush1.bf16.msra.mxu0 0
    %737 = vmatprep.subr.bf16.mxu0 0
    %738 = vmatpush1.bf16.msra.mxu0 0
    %739 = vmatprep.subr.bf16.mxu0 0
    %740 = vmatpush1.bf16.msra.mxu0 0
    %741 = vmatprep.subr.bf16.mxu0 0
    %742 = vmatpush1.bf16.msra.mxu0 0
    %743 = vmatprep.subr.bf16.mxu0 0
    %744 = vmatpush1.bf16.msra.mxu0 0
    %745 = vmatprep.mubr.bf16.mxu0 0
    %746 = vmatmul.mubr.bf16.gmra.mrb[0].mxu0 %v711
    %v747 = vpop.f32.mrb[0].mxu0
    %v748 = vadd.f32 %v684, %v747
    %v749 = vpop.f32.mrb[0].mxu0
    %v750 = vpop.f32.mrb[0].mxu0
    %v751 = vpop.f32.mrb[0].mxu0
    %752 = vdwg.mxu0
    %v753 = vxor.u32 %v748, 2147483648
    %v754 = vmul.f32 %v753, 1.442695
    %v755 = vpow.pop %v754
    %v756 = vadd.f32 %v755, 1.0
    %v757 = vrcp.pop %v756
    %v758 = vmul.f32 1.0, %v757
    %v759 = vmul.f32 %v748, %v758
    %v760 = vpack.c.bf16 %v759, %v759
    %s761 = scalar_lea.vmem %s11, 32
    %v762 = vld [vmem:[%s761] sm:$0xf]
    %v763 = vld [vmem:[%s761 + $0x4] sm:$0xf]
    %v764 = vld [vmem:[%s761 + $0x8] sm:$0xf]
    %v765 = vld [vmem:[%s761 + $0xc] sm:$0xf]
    %v766 = vld [vmem:[%s761 + $0x10] sm:$0xf]
    %v767 = vld [vmem:[%s761 + $0x14] sm:$0xf]
    %v768 = vld [vmem:[%s761 + $0x18] sm:$0xf]
    %v769 = vld [vmem:[%s761 + $0x1c] sm:$0xf]
    %s770 = scalar_lea.vmem %s12, 1
    %v771 = vld [vmem:[%s770] sm:$0x1]
    %v773 = vlaneseq
    %v774 = vshrl.u32 %v773, 7
    %v775 = vsub.s32 0, %v774
    %v776 = vrot.slane %v771, %v775
    %v786 = vunpack.c.l.b16 %v762
    %v787 = vunpack.c.l.b16 %v763
    %v788 = vunpack.c.l.b16 %v764
    %v789 = vunpack.c.l.b16 %v765
    %v790 = vunpack.c.l.b16 %v766
    %v791 = vunpack.c.l.b16 %v767
    %v792 = vunpack.c.l.b16 %v768
    %v793 = vunpack.c.l.b16 %v769
    %v794 = vpack.c.b16 %v787, %v786
    %v795 = vpack.c.b16 %v789, %v788
    %v796 = vpack.c.b16 %v791, %v790
    %v797 = vpack.c.b16 %v793, %v792
    %v803 = vsel %vm423, %v760, 0
    %805 = vmatprep.subr.bf16.mxu0 0
    %806 = vmatpush1.bf16.msra.mxu0 %v794
    %807 = vmatprep.subr.bf16.mxu0 0
    %808 = vmatpush1.bf16.msra.mxu0 %v795
    %809 = vmatprep.subr.bf16.mxu0 0
    %810 = vmatpush1.bf16.msra.mxu0 %v796
    %811 = vmatprep.subr.bf16.mxu0 0
    %812 = vmatpush1.bf16.msra.mxu0 %v797
    %813 = vmatprep.subr.bf16.mxu0 0
    %814 = vmatpush1.bf16.msra.mxu0 0
    %815 = vmatprep.subr.bf16.mxu0 0
    %816 = vmatpush1.bf16.msra.mxu0 0
    %817 = vmatprep.subr.bf16.mxu0 0
    %818 = vmatpush1.bf16.msra.mxu0 0
    %819 = vmatprep.subr.bf16.mxu0 0
    %820 = vmatpush1.bf16.msra.mxu0 0
    %821 = vmatprep.subr.bf16.mxu0 0
    %822 = vmatpush1.bf16.msra.mxu0 0
    %823 = vmatprep.subr.bf16.mxu0 0
    %824 = vmatpush1.bf16.msra.mxu0 0
    %825 = vmatprep.subr.bf16.mxu0 0
    %826 = vmatpush1.bf16.msra.mxu0 0
    %827 = vmatprep.subr.bf16.mxu0 0
    %828 = vmatpush1.bf16.msra.mxu0 0
    %829 = vmatprep.subr.bf16.mxu0 0
    %830 = vmatpush1.bf16.msra.mxu0 0
    %831 = vmatprep.subr.bf16.mxu0 0
    %832 = vmatpush1.bf16.msra.mxu0 0
    %833 = vmatprep.subr.bf16.mxu0 0
    %834 = vmatpush1.bf16.msra.mxu0 0
    %835 = vmatprep.subr.bf16.mxu0 0
    %836 = vmatpush1.bf16.msra.mxu0 0
    %837 = vmatprep.mubr.bf16.mxu0 0
    %838 = vmatmul.mubr.bf16.gmra.mrb[0].mxu0 %v803
    %v839 = vpop.f32.mrb[0].mxu0
    %v840 = vadd.f32 %v776, %v839
    %v841 = vpop.f32.mrb[0].mxu0
    %v842 = vpop.f32.mrb[0].mxu0
    %v843 = vpop.f32.mrb[0].mxu0
    %844 = vdwg.mxu0
    %v845 = vadd.f32 %v557, %v840
    %v846 = vsel %vm234, %v845, 0.0
    %847 = vadd.xlane.f32.xlu0 %v846
    %v848 = vpop.xlane.xlu0 %847
    %v849 = vmul.f32 %v848, %v282
    %v850 = vsub.f32 %v845, %v849
    %v851 = vmul.f32 %v850, %v850
    %v852 = vsel %vm234, %v851, 0.0
    %853 = vadd.xlane.f32.xlu0 %v852
    %v854 = vpop.xlane.xlu0 %853
    %v855 = vmul.f32 %v854, %v282
    %v856 = vadd.f32 %v855, 1e-05
    %v857 = vrsqrt.pop %v856
    %v858 = vmul.f32 %v850, %v857
    %s859 = scalar_lea.vmem %s4, 2
    %v860 = vld [vmem:[%s859] sm:$0x1]
    %v862 = vlaneseq
    %v863 = vshrl.u32 %v862, 7
    %v864 = vsub.s32 0, %v863
    %v865 = vrot.slane %v860, %v864
    %v867 = vmul.f32 %v858, %v865
    %s868 = scalar_lea.vmem [#allocation7], 2
    %v869 = vld [vmem:[%s868] sm:$0x1]
    %v871 = vlaneseq
    %v872 = vshrl.u32 %v871, 7
    %v873 = vsub.s32 0, %v872
    %v874 = vrot.slane %v869, %v873
    %v876 = vadd.f32 %v867, %v874
    %v877 = vxor.u32 %v876, 2147483648
    %v878 = vmul.f32 %v877, 1.442695
    %v879 = vpow.pop %v878
    %v880 = vadd.f32 %v879, 1.0
    %v881 = vrcp.pop %v880
    %v882 = vmul.f32 1.0, %v881
    %v883 = vmul.f32 %v876, %v882
    %v884 = vpack.c.bf16 %v883, %v883
    %s885 = scalar_lea.vmem %s6, 32
    %v886 = vld [vmem:[%s885] sm:$0xf]
    %v887 = vld [vmem:[%s885 + $0x4] sm:$0xf]
    %v888 = vld [vmem:[%s885 + $0x8] sm:$0xf]
    %v889 = vld [vmem:[%s885 + $0xc] sm:$0xf]
    %v894 = vunpack.c.l.b16 %v886
    %v895 = vunpack.c.l.b16 %v887
    %v896 = vunpack.c.l.b16 %v888
    %v897 = vunpack.c.l.b16 %v889
    %v898 = vpack.c.b16 %v895, %v894
    %v899 = vpack.c.b16 %v897, %v896
    %v903 = vsel %vm234, %v884, 0
    %905 = vmatprep.subr.bf16.mxu0 0
    %906 = vmatpush1.bf16.msra.mxu0 %v898
    %907 = vmatprep.subr.bf16.mxu0 0
    %908 = vmatpush1.bf16.msra.mxu0 %v899
    %909 = vmatprep.subr.bf16.mxu0 0
    %910 = vmatpush1.bf16.msra.mxu0 0
    %911 = vmatprep.subr.bf16.mxu0 0
    %912 = vmatpush1.bf16.msra.mxu0 0
    %913 = vmatprep.subr.bf16.mxu0 0
    %914 = vmatpush1.bf16.msra.mxu0 0
    %915 = vmatprep.subr.bf16.mxu0 0
    %916 = vmatpush1.bf16.msra.mxu0 0
    %917 = vmatprep.subr.bf16.mxu0 0
    %918 = vmatpush1.bf16.msra.mxu0 0
    %919 = vmatprep.subr.bf16.mxu0 0
    %920 = vmatpush1.bf16.msra.mxu0 0
    %921 = vmatprep.subr.bf16.mxu0 0
    %922 = vmatpush1.bf16.msra.mxu0 0
    %923 = vmatprep.subr.bf16.mxu0 0
    %924 = vmatpush1.bf16.msra.mxu0 0
    %925 = vmatprep.subr.bf16.mxu0 0
    %926 = vmatpush1.bf16.msra.mxu0 0
    %927 = vmatprep.subr.bf16.mxu0 0
    %928 = vmatpush1.bf16.msra.mxu0 0
    %929 = vmatprep.subr.bf16.mxu0 0
    %930 = vmatpush1.bf16.msra.mxu0 0
    %931 = vmatprep.subr.bf16.mxu0 0
    %932 = vmatpush1.bf16.msra.mxu0 0
    %933 = vmatprep.subr.bf16.mxu0 0
    %934 = vmatpush1.bf16.msra.mxu0 0
    %935 = vmatprep.subr.bf16.mxu0 0
    %936 = vmatpush1.bf16.msra.mxu0 0
    %937 = vmatprep.mubr.bf16.mxu0 0
    %938 = vmatmul.mubr.bf16.gmra.mrb[0].mxu0 %v903
    %v939 = vpop.f32.mrb[0].mxu0
    %v940 = vadd.f32 %v275, %v939
    %v941 = vpop.f32.mrb[0].mxu0
    %v942 = vpop.f32.mrb[0].mxu0
    %v943 = vpop.f32.mrb[0].mxu0
    %944 = vdwg.mxu0
    %v945 = vxor.u32 %v940, 2147483648
    %v946 = vmul.f32 %v945, 1.442695
    %v947 = vpow.pop %v946
    %v948 = vadd.f32 %v947, 1.0
    %v949 = vrcp.pop %v948
    %v950 = vmul.f32 1.0, %v949
    %v951 = vmul.f32 %v940, %v950
    %v952 = vpack.c.bf16 %v951, %v951
    %s953 = scalar_lea.vmem %s9, 64
    %v954 = vld [vmem:[%s953] sm:$0xf]
    %v955 = vld [vmem:[%s953 + $0x4] sm:$0xf]
    %v956 = vld [vmem:[%s953 + $0x8] sm:$0xf]
    %v957 = vld [vmem:[%s953 + $0xc] sm:$0xf]
    %v958 = vld [vmem:[%s953 + $0x10] sm:$0xf]
    %v959 = vld [vmem:[%s953 + $0x14] sm:$0xf]
    %v960 = vld [vmem:[%s953 + $0x18] sm:$0xf]
    %v961 = vld [vmem:[%s953 + $0x1c] sm:$0xf]
    %s962 = scalar_lea.vmem [#allocation12], 2
    %v963 = vld [vmem:[%s962] sm:$0x1]
    %v965 = vlaneseq
    %v966 = vshrl.u32 %v965, 7
    %v967 = vsub.s32 0, %v966
    %v968 = vrot.slane %v963, %v967
    %v978 = vunpack.c.l.b16 %v954
    %v979 = vunpack.c.l.b16 %v955
    %v980 = vunpack.c.l.b16 %v956
    %v981 = vunpack.c.l.b16 %v957
    %v982 = vunpack.c.l.b16 %v958
    %v983 = vunpack.c.l.b16 %v959
    %v984 = vunpack.c.l.b16 %v960
    %v985 = vunpack.c.l.b16 %v961
    %v986 = vpack.c.b16 %v979, %v978
    %v987 = vpack.c.b16 %v981, %v980
    %v988 = vpack.c.b16 %v983, %v982
    %v989 = vpack.c.b16 %v985, %v984
    %v995 = vsel %vm423, %v952, 0
    %997 = vmatprep.subr.bf16.mxu0 0
    %998 = vmatpush1.bf16.msra.mxu0 %v986
    %999 = vmatprep.subr.bf16.mxu0 0
    %1000 = vmatpush1.bf16.msra.mxu0 %v987
    %1001 = vmatprep.subr.bf16.mxu0 0
    %1002 = vmatpush1.bf16.msra.mxu0 %v988
    %1003 = vmatprep.subr.bf16.mxu0 0
    %1004 = vmatpush1.bf16.msra.mxu0 %v989
    %1005 = vmatprep.subr.bf16.mxu0 0
    %1006 = vmatpush1.bf16.msra.mxu0 0
    %1007 = vmatprep.subr.bf16.mxu0 0
    %1008 = vmatpush1.bf16.msra.mxu0 0
    %1009 = vmatprep.subr.bf16.mxu0 0
    %1010 = vmatpush1.bf16.msra.mxu0 0
    %1011 = vmatprep.subr.bf16.mxu0 0
    %1012 = vmatpush1.bf16.msra.mxu0 0
    %1013 = vmatprep.subr.bf16.mxu0 0
    %1014 = vmatpush1.bf16.msra.mxu0 0
    %1015 = vmatprep.subr.bf16.mxu0 0
    %1016 = vmatpush1.bf16.msra.mxu0 0
    %1017 = vmatprep.subr.bf16.mxu0 0
    %1018 = vmatpush1.bf16.msra.mxu0 0
    %1019 = vmatprep.subr.bf16.mxu0 0
    %1020 = vmatpush1.bf16.msra.mxu0 0
    %1021 = vmatprep.subr.bf16.mxu0 0
    %1022 = vmatpush1.bf16.msra.mxu0 0
    %1023 = vmatprep.subr.bf16.mxu0 0
    %1024 = vmatpush1.bf16.msra.mxu0 0
    %1025 = vmatprep.subr.bf16.mxu0 0
    %1026 = vmatpush1.bf16.msra.mxu0 0
    %1027 = vmatprep.subr.bf16.mxu0 0
    %1028 = vmatpush1.bf16.msra.mxu0 0
    %1029 = vmatprep.mubr.bf16.mxu0 0
    %1030 = vmatmul.mubr.bf16.gmra.mrb[0].mxu0 %v995
    %v1031 = vpop.f32.mrb[0].mxu0
    %v1032 = vadd.f32 %v968, %v1031
    %v1033 = vpop.f32.mrb[0].mxu0
    %v1034 = vpop.f32.mrb[0].mxu0
    %v1035 = vpop.f32.mrb[0].mxu0
    %1036 = vdwg.mxu0
    %v1037 = vxor.u32 %v1032, 2147483648
    %v1038 = vmul.f32 %v1037, 1.442695
    %v1039 = vpow.pop %v1038
    %v1040 = vadd.f32 %v1039, 1.0
    %v1041 = vrcp.pop %v1040
    %v1042 = vmul.f32 1.0, %v1041
    %v1043 = vmul.f32 %v1032, %v1042
    %v1044 = vpack.c.bf16 %v1043, %v1043
    %s1045 = scalar_lea.vmem %s11, 64
    %v1046 = vld [vmem:[%s1045] sm:$0xf]
    %v1047 = vld [vmem:[%s1045 + $0x4] sm:$0xf]
    %v1048 = vld [vmem:[%s1045 + $0x8] sm:$0xf]
    %v1049 = vld [vmem:[%s1045 + $0xc] sm:$0xf]
    %v1050 = vld [vmem:[%s1045 + $0x10] sm:$0xf]
    %v1051 = vld [vmem:[%s1045 + $0x14] sm:$0xf]
    %v1052 = vld [vmem:[%s1045 + $0x18] sm:$0xf]
    %v1053 = vld [vmem:[%s1045 + $0x1c] sm:$0xf]
    %s1054 = scalar_lea.vmem %s12, 2
    %v1055 = vld [vmem:[%s1054] sm:$0x1]
    %v1057 = vlaneseq
    %v1058 = vshrl.u32 %v1057, 7
    %v1059 = vsub.s32 0, %v1058
    %v1060 = vrot.slane %v1055, %v1059
    %v1070 = vunpack.c.l.b16 %v1046
    %v1071 = vunpack.c.l.b16 %v1047
    %v1072 = vunpack.c.l.b16 %v1048
    %v1073 = vunpack.c.l.b16 %v1049
    %v1074 = vunpack.c.l.b16 %v1050
    %v1075 = vunpack.c.l.b16 %v1051
    %v1076 = vunpack.c.l.b16 %v1052
    %v1077 = vunpack.c.l.b16 %v1053
    %v1078 = vpack.c.b16 %v1071, %v1070
    %v1079 = vpack.c.b16 %v1073, %v1072
    %v1080 = vpack.c.b16 %v1075, %v1074
    %v1081 = vpack.c.b16 %v1077, %v1076
    %v1087 = vsel %vm423, %v1044, 0
    %1089 = vmatprep.subr.bf16.mxu0 0
    %1090 = vmatpush1.bf16.msra.mxu0 %v1078
    %1091 = vmatprep.subr.bf16.mxu0 0
    %1092 = vmatpush1.bf16.msra.mxu0 %v1079
    %1093 = vmatprep.subr.bf16.mxu0 0
    %1094 = vmatpush1.bf16.msra.mxu0 %v1080
    %1095 = vmatprep.subr.bf16.mxu0 0
    %1096 = vmatpush1.bf16.msra.mxu0 %v1081
    %1097 = vmatprep.subr.bf16.mxu0 0
    %1098 = vmatpush1.bf16.msra.mxu0 0
    %1099 = vmatprep.subr.bf16.mxu0 0
    %1100 = vmatpush1.bf16.msra.mxu0 0
    %1101 = vmatprep.subr.bf16.mxu0 0
    %1102 = vmatpush1.bf16.msra.mxu0 0
    %1103 = vmatprep.subr.bf16.mxu0 0
    %1104 = vmatpush1.bf16.msra.mxu0 0
    %1105 = vmatprep.subr.bf16.mxu0 0
    %1106 = vmatpush1.bf16.msra.mxu0 0
    %1107 = vmatprep.subr.bf16.mxu0 0
    %1108 = vmatpush1.bf16.msra.mxu0 0
    %1109 = vmatprep.subr.bf16.mxu0 0
    %1110 = vmatpush1.bf16.msra.mxu0 0
    %1111 = vmatprep.subr.bf16.mxu0 0
    %1112 = vmatpush1.bf16.msra.mxu0 0
    %1113 = vmatprep.subr.bf16.mxu0 0
    %1114 = vmatpush1.bf16.msra.mxu0 0
    %1115 = vmatprep.subr.bf16.mxu0 0
    %1116 = vmatpush1.bf16.msra.mxu0 0
    %1117 = vmatprep.subr.bf16.mxu0 0
    %1118 = vmatpush1.bf16.msra.mxu0 0
    %1119 = vmatprep.subr.bf16.mxu0 0
    %1120 = vmatpush1.bf16.msra.mxu0 0
    %1121 = vmatprep.mubr.bf16.mxu0 0
    %1122 = vmatmul.mubr.bf16.gmra.mrb[0].mxu0 %v1087
    %v1123 = vpop.f32.mrb[0].mxu0
    %v1124 = vadd.f32 %v1060, %v1123
    %v1125 = vpop.f32.mrb[0].mxu0
    %v1126 = vpop.f32.mrb[0].mxu0
    %v1127 = vpop.f32.mrb[0].mxu0
    %1128 = vdwg.mxu0
    %v1129 = vadd.f32 %v845, %v1124
    %v1130 = vsel %vm234, %v1129, 0.0
    %1131 = vadd.xlane.f32.xlu0 %v1130
    %v1132 = vpop.xlane.xlu0 %1131
    %v1133 = vmul.f32 %v1132, %v282
    %v1134 = vsub.f32 %v1129, %v1133
    %v1135 = vmul.f32 %v1134, %v1134
    %v1136 = vsel %vm234, %v1135, 0.0
    %1137 = vadd.xlane.f32.xlu0 %v1136
    %v1138 = vpop.xlane.xlu0 %1137
    %v1139 = vmul.f32 %v1138, %v282
    %v1140 = vadd.f32 %v1139, 1e-05
    %v1141 = vrsqrt.pop %v1140
    %v1142 = vmul.f32 %v1134, %v1141
    %s1143 = scalar_lea.vmem %s4, 3
    %v1144 = vld [vmem:[%s1143] sm:$0x1]
    %v1146 = vlaneseq
    %v1147 = vshrl.u32 %v1146, 7
    %v1148 = vsub.s32 0, %v1147
    %v1149 = vrot.slane %v1144, %v1148
    %v1151 = vmul.f32 %v1142, %v1149
    %s1152 = scalar_lea.vmem [#allocation7], 3
    %v1153 = vld [vmem:[%s1152] sm:$0x1]
    %v1155 = vlaneseq
    %v1156 = vshrl.u32 %v1155, 7
    %v1157 = vsub.s32 0, %v1156
    %v1158 = vrot.slane %v1153, %v1157
    %v1160 = vadd.f32 %v1151, %v1158
    %v1161 = vxor.u32 %v1160, 2147483648
    %v1162 = vmul.f32 %v1161, 1.442695
    %v1163 = vpow.pop %v1162
    %v1164 = vadd.f32 %v1163, 1.0
    %v1165 = vrcp.pop %v1164
    %v1166 = vmul.f32 1.0, %v1165
    %v1167 = vmul.f32 %v1160, %v1166
    %v1168 = vpack.c.bf16 %v1167, %v1167
    %s1169 = scalar_lea.vmem %s6, 48
    %v1170 = vld [vmem:[%s1169] sm:$0xf]
    %v1171 = vld [vmem:[%s1169 + $0x4] sm:$0xf]
    %v1172 = vld [vmem:[%s1169 + $0x8] sm:$0xf]
    %v1173 = vld [vmem:[%s1169 + $0xc] sm:$0xf]
    %v1178 = vunpack.c.l.b16 %v1170
    %v1179 = vunpack.c.l.b16 %v1171
    %v1180 = vunpack.c.l.b16 %v1172
    %v1181 = vunpack.c.l.b16 %v1173
    %v1182 = vpack.c.b16 %v1179, %v1178
    %v1183 = vpack.c.b16 %v1181, %v1180
    %1187 = vrot.lane.b32.xlu0 %v275, 64
    %v1188 = vpop.permute.xlu0 %1187
    %v1191 = vsel %vm234, %v1168, 0
    %1193 = vmatprep.subr.bf16.mxu0 0
    %1194 = vmatpush1.bf16.msra.mxu0 %v1182
    %1195 = vmatprep.subr.bf16.mxu0 0
    %1196 = vmatpush1.bf16.msra.mxu0 %v1183
    %1197 = vmatprep.subr.bf16.mxu0 0
    %1198 = vmatpush1.bf16.msra.mxu0 0
    %1199 = vmatprep.subr.bf16.mxu0 0
    %1200 = vmatpush1.bf16.msra.mxu0 0
    %1201 = vmatprep.subr.bf16.mxu0 0
    %1202 = vmatpush1.bf16.msra.mxu0 0
    %1203 = vmatprep.subr.bf16.mxu0 0
    %1204 = vmatpush1.bf16.msra.mxu0 0
    %1205 = vmatprep.subr.bf16.mxu0 0
    %1206 = vmatpush1.bf16.msra.mxu0 0
    %1207 = vmatprep.subr.bf16.mxu0 0
    %1208 = vmatpush1.bf16.msra.mxu0 0
    %1209 = vmatprep.subr.bf16.mxu0 0
    %1210 = vmatpush1.bf16.msra.mxu0 0
    %1211 = vmatprep.subr.bf16.mxu0 0
    %1212 = vmatpush1.bf16.msra.mxu0 0
    %1213 = vmatprep.subr.bf16.mxu0 0
    %1214 = vmatpush1.bf16.msra.mxu0 0
    %1215 = vmatprep.subr.bf16.mxu0 0
    %1216 = vmatpush1.bf16.msra.mxu0 0
    %1217 = vmatprep.subr.bf16.mxu0 0
    %1218 = vmatpush1.bf16.msra.mxu0 0
    %1219 = vmatprep.subr.bf16.mxu0 0
    %1220 = vmatpush1.bf16.msra.mxu0 0
    %1221 = vmatprep.subr.bf16.mxu0 0
    %1222 = vmatpush1.bf16.msra.mxu0 0
    %1223 = vmatprep.subr.bf16.mxu0 0
    %1224 = vmatpush1.bf16.msra.mxu0 0
    %1225 = vmatprep.mubr.bf16.mxu0 0
    %1226 = vmatmul.mubr.bf16.gmra.mrb[0].mxu0 %v1191
    %v1227 = vpop.f32.mrb[0].mxu0
    %v1228 = vadd.f32 %v1188, %v1227
    %v1229 = vpop.f32.mrb[0].mxu0
    %v1230 = vpop.f32.mrb[0].mxu0
    %v1231 = vpop.f32.mrb[0].mxu0
    %1232 = vdwg.mxu0
    %v1233 = vxor.u32 %v1228, 2147483648
    %v1234 = vmul.f32 %v1233, 1.442695
    %v1235 = vpow.pop %v1234
    %v1236 = vadd.f32 %v1235, 1.0
    %v1237 = vrcp.pop %v1236
    %v1238 = vmul.f32 1.0, %v1237
    %v1239 = vmul.f32 %v1228, %v1238
    %v1240 = vpack.c.bf16 %v1239, %v1239
    %s1241 = scalar_lea.vmem %s9, 96
    %v1242 = vld [vmem:[%s1241] sm:$0xf]
    %v1243 = vld [vmem:[%s1241 + $0x4] sm:$0xf]
    %v1244 = vld [vmem:[%s1241 + $0x8] sm:$0xf]
    %v1245 = vld [vmem:[%s1241 + $0xc] sm:$0xf]
    %v1246 = vld [vmem:[%s1241 + $0x10] sm:$0xf]
    %v1247 = vld [vmem:[%s1241 + $0x14] sm:$0xf]
    %v1248 = vld [vmem:[%s1241 + $0x18] sm:$0xf]
    %v1249 = vld [vmem:[%s1241 + $0x1c] sm:$0xf]
    %s1250 = scalar_lea.vmem [#allocation12], 3
    %v1251 = vld [vmem:[%s1250] sm:$0x1]
    %v1253 = vlaneseq
    %v1254 = vshrl.u32 %v1253, 7
    %v1255 = vsub.s32 0, %v1254
    %v1256 = vrot.slane %v1251, %v1255
    %v1266 = vunpack.c.l.b16 %v1242
    %v1267 = vunpack.c.l.b16 %v1243
    %v1268 = vunpack.c.l.b16 %v1244
    %v1269 = vunpack.c.l.b16 %v1245
    %v1270 = vunpack.c.l.b16 %v1246
    %v1271 = vunpack.c.l.b16 %v1247
    %v1272 = vunpack.c.l.b16 %v1248
    %v1273 = vunpack.c.l.b16 %v1249
    %v1274 = vpack.c.b16 %v1267, %v1266
    %v1275 = vpack.c.b16 %v1269, %v1268
    %v1276 = vpack.c.b16 %v1271, %v1270
    %v1277 = vpack.c.b16 %v1273, %v1272
    %v1283 = vsel %vm423, %v1240, 0
    %1285 = vmatprep.subr.bf16.mxu0 0
    %1286 = vmatpush1.bf16.msra.mxu0 %v1274
    %1287 = vmatprep.subr.bf16.mxu0 0
    %1288 = vmatpush1.bf16.msra.mxu0 %v1275
    %1289 = vmatprep.subr.bf16.mxu0 0
    %1290 = vmatpush1.bf16.msra.mxu0 %v1276
    %1291 = vmatprep.subr.bf16.mxu0 0
    %1292 = vmatpush1.bf16.msra.mxu0 %v1277
    %1293 = vmatprep.subr.bf16.mxu0 0
    %1294 = vmatpush1.bf16.msra.mxu0 0
    %1295 = vmatprep.subr.bf16.mxu0 0
    %1296 = vmatpush1.bf16.msra.mxu0 0
    %1297 = vmatprep.subr.bf16.mxu0 0
    %1298 = vmatpush1.bf16.msra.mxu0 0
    %1299 = vmatprep.subr.bf16.mxu0 0
    %1300 = vmatpush1.bf16.msra.mxu0 0
    %1301 = vmatprep.subr.bf16.mxu0 0
    %1302 = vmatpush1.bf16.msra.mxu0 0
    %1303 = vmatprep.subr.bf16.mxu0 0
    %1304 = vmatpush1.bf16.msra.mxu0 0
    %1305 = vmatprep.subr.bf16.mxu0 0
    %1306 = vmatpush1.bf16.msra.mxu0 0
    %1307 = vmatprep.subr.bf16.mxu0 0
    %1308 = vmatpush1.bf16.msra.mxu0 0
    %1309 = vmatprep.subr.bf16.mxu0 0
    %1310 = vmatpush1.bf16.msra.mxu0 0
    %1311 = vmatprep.subr.bf16.mxu0 0
    %1312 = vmatpush1.bf16.msra.mxu0 0
    %1313 = vmatprep.subr.bf16.mxu0 0
    %1314 = vmatpush1.bf16.msra.mxu0 0
    %1315 = vmatprep.subr.bf16.mxu0 0
    %1316 = vmatpush1.bf16.msra.mxu0 0
    %1317 = vmatprep.mubr.bf16.mxu0 0
    %1318 = vmatmul.mubr.bf16.gmra.mrb[0].mxu0 %v1283
    %v1319 = vpop.f32.mrb[0].mxu0
    %v1320 = vadd.f32 %v1256, %v1319
    %v1321 = vpop.f32.mrb[0].mxu0
    %v1322 = vpop.f32.mrb[0].mxu0
    %v1323 = vpop.f32.mrb[0].mxu0
    %1324 = vdwg.mxu0
    %v1325 = vxor.u32 %v1320, 2147483648
    %v1326 = vmul.f32 %v1325, 1.442695
    %v1327 = vpow.pop %v1326
    %v1328 = vadd.f32 %v1327, 1.0
    %v1329 = vrcp.pop %v1328
    %v1330 = vmul.f32 1.0, %v1329
    %v1331 = vmul.f32 %v1320, %v1330
    %v1332 = vpack.c.bf16 %v1331, %v1331
    %s1333 = scalar_lea.vmem %s11, 96
    %v1334 = vld [vmem:[%s1333] sm:$0xf]
    %v1335 = vld [vmem:[%s1333 + $0x4] sm:$0xf]
    %v1336 = vld [vmem:[%s1333 + $0x8] sm:$0xf]
    %v1337 = vld [vmem:[%s1333 + $0xc] sm:$0xf]
    %v1338 = vld [vmem:[%s1333 + $0x10] sm:$0xf]
    %v1339 = vld [vmem:[%s1333 + $0x14] sm:$0xf]
    %v1340 = vld [vmem:[%s1333 + $0x18] sm:$0xf]
    %v1341 = vld [vmem:[%s1333 + $0x1c] sm:$0xf]
    %s1342 = scalar_lea.vmem %s12, 3
    %v1343 = vld [vmem:[%s1342] sm:$0x1]
    %v1345 = vlaneseq
    %v1346 = vshrl.u32 %v1345, 7
    %v1347 = vsub.s32 0, %v1346
    %v1348 = vrot.slane %v1343, %v1347
    %v1358 = vunpack.c.l.b16 %v1334
    %v1359 = vunpack.c.l.b16 %v1335
    %v1360 = vunpack.c.l.b16 %v1336
    %v1361 = vunpack.c.l.b16 %v1337
    %v1362 = vunpack.c.l.b16 %v1338
    %v1363 = vunpack.c.l.b16 %v1339
    %v1364 = vunpack.c.l.b16 %v1340
    %v1365 = vunpack.c.l.b16 %v1341
    %v1366 = vpack.c.b16 %v1359, %v1358
    %v1367 = vpack.c.b16 %v1361, %v1360
    %v1368 = vpack.c.b16 %v1363, %v1362
    %v1369 = vpack.c.b16 %v1365, %v1364
    %v1375 = vsel %vm423, %v1332, 0
    %1377 = vmatprep.subr.bf16.mxu0 0
    %1378 = vmatpush1.bf16.msra.mxu0 %v1366
    %1379 = vmatprep.subr.bf16.mxu0 0
    %1380 = vmatpush1.bf16.msra.mxu0 %v1367
    %1381 = vmatprep.subr.bf16.mxu0 0
    %1382 = vmatpush1.bf16.msra.mxu0 %v1368
    %1383 = vmatprep.subr.bf16.mxu0 0
    %1384 = vmatpush1.bf16.msra.mxu0 %v1369
    %1385 = vmatprep.subr.bf16.mxu0 0
    %1386 = vmatpush1.bf16.msra.mxu0 0
    %1387 = vmatprep.subr.bf16.mxu0 0
    %1388 = vmatpush1.bf16.msra.mxu0 0
    %1389 = vmatprep.subr.bf16.mxu0 0
    %1390 = vmatpush1.bf16.msra.mxu0 0
    %1391 = vmatprep.subr.bf16.mxu0 0
    %1392 = vmatpush1.bf16.msra.mxu0 0
    %1393 = vmatprep.subr.bf16.mxu0 0
    %1394 = vmatpush1.bf16.msra.mxu0 0
    %1395 = vmatprep.subr.bf16.mxu0 0
    %1396 = vmatpush1.bf16.msra.mxu0 0
    %1397 = vmatprep.subr.bf16.mxu0 0
    %1398 = vmatpush1.bf16.msra.mxu0 0
    %1399 = vmatprep.subr.bf16.mxu0 0
    %1400 = vmatpush1.bf16.msra.mxu0 0
    %1401 = vmatprep.subr.bf16.mxu0 0
    %1402 = vmatpush1.bf16.msra.mxu0 0
    %1403 = vmatprep.subr.bf16.mxu0 0
    %1404 = vmatpush1.bf16.msra.mxu0 0
    %1405 = vmatprep.subr.bf16.mxu0 0
    %1406 = vmatpush1.bf16.msra.mxu0 0
    %1407 = vmatprep.subr.bf16.mxu0 0
    %1408 = vmatpush1.bf16.msra.mxu0 0
    %1409 = vmatprep.mubr.bf16.mxu0 0
    %1410 = vmatmul.mubr.bf16.gmra.mrb[0].mxu0 %v1375
    %v1411 = vpop.f32.mrb[0].mxu0
    %v1412 = vadd.f32 %v1348, %v1411
    %v1413 = vpop.f32.mrb[0].mxu0
    %v1414 = vpop.f32.mrb[0].mxu0
    %v1415 = vpop.f32.mrb[0].mxu0
    %1416 = vdwg.mxu0
    %v1417 = vadd.f32 %v1129, %v1412
    %v1418 = vpack.c.bf16 %v1417, %v1417
    %v1419 = vld [vmem:[%s13] sm:$0xf]
    %v1420 = vld [vmem:[%s13 + $0x4] sm:$0xf]
    %v1421 = vld [vmem:[%s13 + $0x8] sm:$0xf]
    %v1422 = vld [vmem:[%s13 + $0xc] sm:$0xf]
    %v1423 = vld [vmem:[%s14] sm:$0x1]
    %v1425 = vlaneseq
    %v1426 = vshrl.u32 %v1425, 7
    %v1427 = vsub.s32 0, %v1426
    %v1428 = vrot.slane %v1423, %v1427
    %v1434 = vunpack.c.l.b16 %v1419
    %v1435 = vunpack.c.l.b16 %v1420
    %v1436 = vunpack.c.l.b16 %v1421
    %v1437 = vunpack.c.l.b16 %v1422
    %v1438 = vpack.c.b16 %v1435, %v1434
    %v1439 = vpack.c.b16 %v1437, %v1436
    %v1443 = vsel %vm234, %v1418, 0
    %1445 = vmatprep.subr.bf16.mxu0 0
    %1446 = vmatpush1.bf16.msra.mxu0 %v1438
    %1447 = vmatprep.subr.bf16.mxu0 0
    %1448 = vmatpush1.bf16.msra.mxu0 %v1439
    %1449 = vmatprep.subr.bf16.mxu0 0
    %1450 = vmatpush1.bf16.msra.mxu0 0
    %1451 = vmatprep.subr.bf16.mxu0 0
    %1452 = vmatpush1.bf16.msra.mxu0 0
    %1453 = vmatprep.subr.bf16.mxu0 0
    %1454 = vmatpush1.bf16.msra.mxu0 0
    %1455 = vmatprep.subr.bf16.mxu0 0
    %1456 = vmatpush1.bf16.msra.mxu0 0
    %1457 = vmatprep.subr.bf16.mxu0 0
    %1458 = vmatpush1.bf16.msra.mxu0 0
    %1459 = vmatprep.subr.bf16.mxu0 0
    %1460 = vmatpush1.bf16.msra.mxu0 0
    %1461 = vmatprep.subr.bf16.mxu0 0
    %1462 = vmatpush1.bf16.msra.mxu0 0
    %1463 = vmatprep.subr.bf16.mxu0 0
    %1464 = vmatpush1.bf16.msra.mxu0 0
    %1465 = vmatprep.subr.bf16.mxu0 0
    %1466 = vmatpush1.bf16.msra.mxu0 0
    %1467 = vmatprep.subr.bf16.mxu0 0
    %1468 = vmatpush1.bf16.msra.mxu0 0
    %1469 = vmatprep.subr.bf16.mxu0 0
    %1470 = vmatpush1.bf16.msra.mxu0 0
    %1471 = vmatprep.subr.bf16.mxu0 0
    %1472 = vmatpush1.bf16.msra.mxu0 0
    %1473 = vmatprep.subr.bf16.mxu0 0
    %1474 = vmatpush1.bf16.msra.mxu0 0
    %1475 = vmatprep.subr.bf16.mxu0 0
    %1476 = vmatpush1.bf16.msra.mxu0 0
    %1477 = vmatprep.mubr.bf16.mxu0 0
    %1478 = vmatmul.mubr.bf16.gmra.mrb[0].mxu0 %v1443
    %v1479 = vpop.f32.mrb[0].mxu0
    %v1480 = vadd.f32 %v1428, %v1479
    %v1481 = vpop.f32.mrb[0].mxu0
    %v1482 = vpop.f32.mrb[0].mxu0
    %v1483 = vpop.f32.mrb[0].mxu0
    %1484 = vdwg.mxu0
    %1485 = vst.msk [vmem:[%s15] sm:$0xff] %vm150, %v1480
    // Predicated region
    $region90: #{tpu_custom_call.1} parent=1 // pred_check
      _
    $region91: #{tpu_custom_call.1} parent=1 // pred_check_branch
      %1487 = sbr.rel (0) target = $region93
    $region92: #{tpu_custom_call.1} parent=1 // pred_region
      _
    $region93: #{tpu_custom_call.1} parent=1 // pred_fallthru
      _
    // Predicated region
    $region94: #{tpu_custom_call.1} parent=1 // pred_check
      _
    $region95: #{tpu_custom_call.1} parent=1 // pred_check_branch
      %1489 = sbr.rel (0) target = $region97
    $region96: #{tpu_custom_call.1} parent=1 // pred_region
      _
    $region97: #{tpu_custom_call.1} parent=1 // pred_fallthru
      _
    %1490 = vsyncpa [#allocation3], 1
    %1491 = vsyncpa [#allocation5], 1
    %1492 = vsyncpa [#allocation8], 1
    %1493 = vsyncpa [#allocation11], 1

</llo_original>
